<compile_context>
chip_gen: v7x
topology: tpu7x:2x2x1
jax: 0.10.0
libtpu: 0.0.40
codegen_flags: <defaults>
</compile_context>

<pallas_src>
import jax
import jax.numpy as jnp
import numpy as np
from jax import lax
from jax.experimental import pallas as pl
from jax.experimental.pallas import tpu as pltpu


def mixed5a_kernel(a0_ref, a1_ref, w_ref, bias_ref, out_ref):
    """One batch image per grid step.

    a0_ref:   (1, (Ho+1)*Wo, 3*C) f32  column-im2col of the EVEN input rows
    a1_ref:   (1,  Ho   *Wo, 3*C) f32  column-im2col of the ODD  input rows
    w_ref:    (3, 3*C, Cout)      bf16 per-kernel-row weights, BN scale folded
    bias_ref: (1, Cout)           f32  folded BN bias
    out_ref:  (1, Ho*Wo, Cout+C)       [conv+BN+ReLU | 3x3/s2 maxpool]
    """
    m = out_ref.shape[1]             # Ho*Wo
    c3 = a0_ref.shape[2]             # 3*C
    c = c3 // 3
    cout = w_ref.shape[2]
    wo = a0_ref.shape[1] - m         # = Wo (row stride inside the flat layout)

    # The three kernel-row taps are contiguous, unit-stride slices.
    t0 = a0_ref[0, 0:m, :]           # input rows 2*r     (kh = 0)
    t1 = a1_ref[0, :, :]             # input rows 2*r + 1 (kh = 1)
    t2 = a0_ref[0, wo:wo + m, :]     # input rows 2*r + 2 (kh = 2)

    # --- conv branch: three bf16 MXU contractions (K = 3*C), f32 accumulate ---
    acc = jnp.dot(t0.astype(jnp.bfloat16), w_ref[0],
                  preferred_element_type=jnp.float32)
    acc = acc + jnp.dot(t1.astype(jnp.bfloat16), w_ref[1],
                        preferred_element_type=jnp.float32)
    acc = acc + jnp.dot(t2.astype(jnp.bfloat16), w_ref[2],
                        preferred_element_type=jnp.float32)
    conv = jnp.maximum(acc + bias_ref[...], 0.0)         # BN bias + ReLU (f32)
    out_ref[0, :, :cout] = conv.astype(out_ref.dtype)

    # --- maxpool branch: exact f32 max over 9 taps (3 lane slices x 3 rows) ---
    def row_max(t):
        return jnp.maximum(jnp.maximum(t[:, 0:c], t[:, c:2 * c]), t[:, 2 * c:])

    pooled = jnp.maximum(jnp.maximum(row_max(t0), row_max(t1)), row_max(t2))
    out_ref[0, :, cout:] = pooled.astype(out_ref.dtype)


def prepare_weights(w_oihw, gamma, beta, run_mean, run_var, eps=1e-3):
    """One-time prep (hoisted out of the serving call): fold the eval-mode BN
    scale into the conv weights, reorder K to (kh, kw*Cin + c) and cast bf16."""
    cout, cin, kh, kw = w_oihw.shape
    inv = gamma / jnp.sqrt(run_var + eps)                       # (Cout,)
    bias = (beta - run_mean * inv).reshape(1, cout).astype(jnp.float32)
    w_folded = w_oihw * inv[:, None, None, None]                # BN scale folded
    w_k = jnp.transpose(w_folded, (2, 3, 1, 0))                 # (kh, kw, Cin, Cout)
    w_k = w_k.reshape(kh, kw * cin, cout).astype(jnp.bfloat16)  # (3, 3*Cin, Cout)
    return w_k, bias


@jax.jit
def mixed_5a_forward(x_nchw, w_k, bias):
    N, C, H, W = x_nchw.shape
    KH, K3, Cout = w_k.shape
    assert KH == 3 and K3 == 3 * C, (w_k.shape, C)
    Ho = (H - 3) // 2 + 1
    Wo = (W - 3) // 2 + 1
    M = Ho * Wo

    # NCHW -> NHWC (interface-mandated; drop if the surrounding model is NHWC).
    x = jnp.transpose(x_nchw, (0, 2, 3, 1))

    # Column-direction im2col + even/odd input-row split, flattened so each
    # kernel-row tap is a contiguous slice inside the kernel.  ~1.5x the input
    # bytes (vs 2.25x full im2col + pad round trips before); values stay f32 so
    # the maxpool branch is exact -- only the matmul operands are bf16.
    def col_taps(rows):                        # (N, R, W, C) -> (N, R*Wo, 3*C)
        R = rows.shape[1]
        taps = [rows[:, :, kw:kw + 2 * Wo:2, :] for kw in range(3)]
        return jnp.concatenate(taps, axis=-1).reshape(N, R * Wo, 3 * C)

    a0 = col_taps(x[:, 0:2 * Ho + 1:2])        # even input rows (Ho + 1 rows)
    a1 = col_taps(x[:, 1:2 * Ho:2])            # odd  input rows (Ho rows)

    out = pl.pallas_call(
        mixed5a_kernel,
        out_shape=jax.ShapeDtypeStruct((N, M, Cout + C), x.dtype),
        grid_spec=pltpu.PrefetchScalarGridSpec(
            num_scalar_prefetch=0,
            grid=(N,),
            in_specs=[
                pl.BlockSpec((1, (Ho + 1) * Wo, 3 * C), lambda n: (n, 0, 0)),
                pl.BlockSpec((1, Ho * Wo, 3 * C), lambda n: (n, 0, 0)),
                # Constant block index -> weights/bias DMA'd once, kept resident.
                pl.BlockSpec((3, 3 * C, Cout), lambda n: (0, 0, 0)),
                pl.BlockSpec((1, Cout), lambda n: (0, 0)),
            ],
            out_specs=pl.BlockSpec((1, M, Cout + C), lambda n: (n, 0, 0)),
        ),
        compiler_params=pltpu.CompilerParams(
            dimension_semantics=("parallel",),   # batch steps are independent
            vmem_limit_bytes=32 * 1024 * 1024,   # safe on v5e/v6e/v7x; blocks are a few MiB
        ),
    )(a0, a1, w_k, bias)

    out = out.reshape(N, Ho, Wo, Cout + C)
    return jnp.transpose(out, (0, 3, 1, 2))      # back to NCHW


def reference(x, w, gamma, beta, mean, var, eps=1e-3, conv_dtype=jnp.float32):
    """XLA reference; conv_dtype selects the conv-operand precision."""
    inv = gamma / jnp.sqrt(var + eps)
    w_folded = (w * inv[:, None, None, None]).astype(conv_dtype)
    conv = lax.conv_general_dilated(
        x.astype(conv_dtype), w_folded, window_strides=(2, 2), padding="VALID",
        dimension_numbers=("NCHW", "OIHW", "NCHW"),
        preferred_element_type=jnp.float32)
    conv = jnp.maximum(conv + (beta - mean * inv)[None, :, None, None], 0.0)
    pool = lax.reduce_window(x, -jnp.inf, lax.max,
                             (1, 1, 3, 3), (1, 1, 2, 2), "VALID")
    return jnp.concatenate([conv, pool], axis=1)


if __name__ == "__main__":
    # Mixed_5a fixes channels at 192 (conv 192->192, k3 s2, no pad).
    N, C, H, W = 2, 192, 15, 15
    Cout = 192

    key = jax.random.PRNGKey(0)
    k_x, k_w, k_g, k_b, k_m, k_v = jax.random.split(key, 6)
    x = jax.random.normal(k_x, (N, C, H, W), jnp.float32)
    w = jax.random.normal(k_w, (Cout, C, 3, 3), jnp.float32) * 0.05
    gamma = jax.random.uniform(k_g, (Cout,), jnp.float32, 0.5, 1.5)
    beta = jax.random.normal(k_b, (Cout,), jnp.float32) * 0.1
    run_mean = jax.random.normal(k_m, (Cout,), jnp.float32) * 0.1
    run_var = jax.random.uniform(k_v, (Cout,), jnp.float32, 0.5, 1.5)

    # One-time weight/BN preparation (eval-mode BN: folded running stats).
    w_k, bias = prepare_weights(w, gamma, beta, run_mean, run_var)
    w_k, bias = jax.block_until_ready((w_k, bias))

    out = jax.block_until_ready(mixed_5a_forward(x, w_k, bias))
    assert out.shape == (N, 2 * C, (H - 3) // 2 + 1, (W - 3) // 2 + 1), out.shape

    # Structural check: reference with identical bf16 quantization points
    # (bf16 operands, f32 accumulation) -> tight tolerance.
    ref_bf16 = jax.block_until_ready(
        reference(x, w, gamma, beta, run_mean, run_var, conv_dtype=jnp.bfloat16))
    np.testing.assert_allclose(np.asarray(out), np.asarray(ref_bf16),
                               rtol=2e-3, atol=2e-3)

    # Semantics check vs the pure-f32 module math (bf16-operand tolerance on
    # the conv branch; the maxpool branch is exact f32).
    ref_f32 = jax.block_until_ready(
        reference(x, w, gamma, beta, run_mean, run_var, conv_dtype=jnp.float32))
    np.testing.assert_allclose(np.asarray(out), np.asarray(ref_f32),
                               rtol=3e-2, atol=3e-2)

    print("KERNEL_OK")
</pallas_src>

<mosaic_0001>
module attributes {stable_mosaic.version = 11 : i64} {
  func.func @mixed5a_kernel(%arg0: i32, %arg1: memref<1x56x576xf32, #tpu.memory_space<vmem>>, %arg2: memref<1x49x576xf32, #tpu.memory_space<vmem>>, %arg3: memref<3x576x192xbf16, #tpu.memory_space<vmem>>, %arg4: memref<1x192xf32, #tpu.memory_space<vmem>>, %arg5: memref<1x49x384xf32, #tpu.memory_space<vmem>>) attributes {dimension_semantics = [#tpu.dimension_semantics<parallel>], iteration_bounds = array<i64: 2>, scalar_prefetch = 0 : i64, scratch_operands = 0 : i64, tpu.core_type = #tpu.core_type<tc>, window_params = [{transform_indices = @transform_0, window_bounds = array<i64: 1, 56, 576>}, {transform_indices = @transform_1, window_bounds = array<i64: 1, 49, 576>}, {pipeline_mode = #tpu.pipeline_mode<synchronous>, transform_indices = @transform_2, window_bounds = array<i64: 3, 576, 192>}, {pipeline_mode = #tpu.pipeline_mode<synchronous>, transform_indices = @transform_3, window_bounds = array<i64: 1, 192>}, {transform_indices = @transform_4, window_bounds = array<i64: 1, 49, 384>}]} {
    %c0 = arith.constant 0 : index
    %c0_0 = arith.constant 0 : index
    %c0_1 = arith.constant 0 : index
    %0 = vector.load %arg1[%c0, %c0_0, %c0_1] : memref<1x56x576xf32, #tpu.memory_space<vmem>>, vector<1x49x576xf32>
    %1 = vector.shape_cast %0 : vector<1x49x576xf32> to vector<49x576xf32>
    %c0_2 = arith.constant 0 : index
    %c0_3 = arith.constant 0 : index
    %c0_4 = arith.constant 0 : index
    %2 = vector.load %arg2[%c0_2, %c0_3, %c0_4] : memref<1x49x576xf32, #tpu.memory_space<vmem>>, vector<1x49x576xf32>
    %3 = vector.shape_cast %2 : vector<1x49x576xf32> to vector<49x576xf32>
    %c0_5 = arith.constant 0 : index
    %c7 = arith.constant 7 : index
    %c0_6 = arith.constant 0 : index
    %4 = vector.load %arg1[%c0_5, %c7, %c0_6] : memref<1x56x576xf32, #tpu.memory_space<vmem>>, vector<1x49x576xf32>
    %5 = vector.shape_cast %4 : vector<1x49x576xf32> to vector<49x576xf32>
    %6 = arith.truncf %1 : vector<49x576xf32> to vector<49x576xbf16>
    %c0_7 = arith.constant 0 : index
    %c0_8 = arith.constant 0 : index
    %c0_9 = arith.constant 0 : index
    %7 = vector.load %arg3[%c0_7, %c0_8, %c0_9] : memref<3x576x192xbf16, #tpu.memory_space<vmem>>, vector<1x576x192xbf16>
    %8 = vector.shape_cast %7 : vector<1x576x192xbf16> to vector<576x192xbf16>
    %cst = arith.constant dense<0.000000e+00> : vector<49x192xf32>
    %9 = tpu.matmul %6, %8, %cst {dimension_numbers = #tpu.dot_dimension_numbers<[1], [0], [0], [1], [0, 0, 1, 1], [], []>} : vector<49x576xbf16>, vector<576x192xbf16>, vector<49x192xf32> -> vector<49x192xf32>
    %10 = arith.truncf %3 : vector<49x576xf32> to vector<49x576xbf16>
    %c1 = arith.constant 1 : index
    %c0_10 = arith.constant 0 : index
    %c0_11 = arith.constant 0 : index
    %11 = vector.load %arg3[%c1, %c0_10, %c0_11] : memref<3x576x192xbf16, #tpu.memory_space<vmem>>, vector<1x576x192xbf16>
    %12 = vector.shape_cast %11 : vector<1x576x192xbf16> to vector<576x192xbf16>
    %cst_12 = arith.constant dense<0.000000e+00> : vector<49x192xf32>
    %13 = tpu.matmul %10, %12, %cst_12 {dimension_numbers = #tpu.dot_dimension_numbers<[1], [0], [0], [1], [0, 0, 1, 1], [], []>} : vector<49x576xbf16>, vector<576x192xbf16>, vector<49x192xf32> -> vector<49x192xf32>
    %14 = arith.addf %9, %13 : vector<49x192xf32>
    %15 = arith.truncf %5 : vector<49x576xf32> to vector<49x576xbf16>
    %c2 = arith.constant 2 : index
    %c0_13 = arith.constant 0 : index
    %c0_14 = arith.constant 0 : index
    %16 = vector.load %arg3[%c2, %c0_13, %c0_14] : memref<3x576x192xbf16, #tpu.memory_space<vmem>>, vector<1x576x192xbf16>
    %17 = vector.shape_cast %16 : vector<1x576x192xbf16> to vector<576x192xbf16>
    %cst_15 = arith.constant dense<0.000000e+00> : vector<49x192xf32>
    %18 = tpu.matmul %15, %17, %cst_15 {dimension_numbers = #tpu.dot_dimension_numbers<[1], [0], [0], [1], [0, 0, 1, 1], [], []>} : vector<49x576xbf16>, vector<576x192xbf16>, vector<49x192xf32> -> vector<49x192xf32>
    %19 = arith.addf %14, %18 : vector<49x192xf32>
    %c0_16 = arith.constant 0 : index
    %c0_17 = arith.constant 0 : index
    %20 = vector.load %arg4[%c0_16, %c0_17] : memref<1x192xf32, #tpu.memory_space<vmem>>, vector<1x192xf32>
    %21 = vector.broadcast %20 : vector<1x192xf32> to vector<49x192xf32>
    %22 = arith.addf %19, %21 : vector<49x192xf32>
    %cst_18 = arith.constant 0.000000e+00 : f32
    %23 = vector.broadcast %cst_18 : f32 to vector<49x192xf32>
    %24 = arith.maximumf %22, %23 : vector<49x192xf32>
    %c0_19 = arith.constant 0 : index
    %c0_20 = arith.constant 0 : index
    %c0_21 = arith.constant 0 : index
    %25 = vector.load %arg5[%c0_19, %c0_20, %c0_21] : memref<1x49x384xf32, #tpu.memory_space<vmem>>, vector<1x49x192xf32>
    %26 = vector.shape_cast %25 : vector<1x49x192xf32> to vector<49x192xf32>
    %27 = vector.shape_cast %24 : vector<49x192xf32> to vector<1x49x192xf32>
    tpu.vector_store %arg5[%c0_19, %c0_20, %c0_21], %27 {strides = array<i32>} : memref<1x49x384xf32, #tpu.memory_space<vmem>>, vector<1x49x192xf32>,
    %28 = vector.extract_strided_slice %1 {offsets = [0, 0], sizes = [49, 192], strides = [1, 1]} : vector<49x576xf32> to vector<49x192xf32>
    %29 = vector.extract_strided_slice %1 {offsets = [0, 192], sizes = [49, 192], strides = [1, 1]} : vector<49x576xf32> to vector<49x192xf32>
    %30 = arith.maximumf %28, %29 : vector<49x192xf32>
    %31 = vector.extract_strided_slice %1 {offsets = [0, 384], sizes = [49, 192], strides = [1, 1]} : vector<49x576xf32> to vector<49x192xf32>
    %32 = arith.maximumf %30, %31 : vector<49x192xf32>
    %33 = vector.extract_strided_slice %3 {offsets = [0, 0], sizes = [49, 192], strides = [1, 1]} : vector<49x576xf32> to vector<49x192xf32>
    %34 = vector.extract_strided_slice %3 {offsets = [0, 192], sizes = [49, 192], strides = [1, 1]} : vector<49x576xf32> to vector<49x192xf32>
    %35 = arith.maximumf %33, %34 : vector<49x192xf32>
    %36 = vector.extract_strided_slice %3 {offsets = [0, 384], sizes = [49, 192], strides = [1, 1]} : vector<49x576xf32> to vector<49x192xf32>
    %37 = arith.maximumf %35, %36 : vector<49x192xf32>
    %38 = arith.maximumf %32, %37 : vector<49x192xf32>
    %39 = vector.extract_strided_slice %5 {offsets = [0, 0], sizes = [49, 192], strides = [1, 1]} : vector<49x576xf32> to vector<49x192xf32>
    %40 = vector.extract_strided_slice %5 {offsets = [0, 192], sizes = [49, 192], strides = [1, 1]} : vector<49x576xf32> to vector<49x192xf32>
    %41 = arith.maximumf %39, %40 : vector<49x192xf32>
    %42 = vector.extract_strided_slice %5 {offsets = [0, 384], sizes = [49, 192], strides = [1, 1]} : vector<49x576xf32> to vector<49x192xf32>
    %43 = arith.maximumf %41, %42 : vector<49x192xf32>
    %44 = arith.maximumf %38, %43 : vector<49x192xf32>
    %c0_22 = arith.constant 0 : index
    %c0_23 = arith.constant 0 : index
    %c192 = arith.constant 192 : index
    %45 = vector.load %arg5[%c0_22, %c0_23, %c192] : memref<1x49x384xf32, #tpu.memory_space<vmem>>, vector<1x49x192xf32>
    %46 = vector.shape_cast %45 : vector<1x49x192xf32> to vector<49x192xf32>
    %47 = vector.shape_cast %44 : vector<49x192xf32> to vector<1x49x192xf32>
    tpu.vector_store %arg5[%c0_22, %c0_23, %c192], %47 {strides = array<i32>} : memref<1x49x384xf32, #tpu.memory_space<vmem>>, vector<1x49x192xf32>,
    return
  }
  func.func @transform_0(%arg0: i32) -> (i32, i32, i32) {
    %c0_i32 = arith.constant 0 : i32
    %c0_i32_0 = arith.constant 0 : i32
    %c0_i32_1 = arith.constant 0 : i32
    return %arg0, %c0_i32, %c0_i32_0 : i32, i32, i32
  }
  func.func @transform_1(%arg0: i32) -> (i32, i32, i32) {
    %c0_i32 = arith.constant 0 : i32
    %c0_i32_0 = arith.constant 0 : i32
    %c0_i32_1 = arith.constant 0 : i32
    return %arg0, %c0_i32, %c0_i32_0 : i32, i32, i32
  }
  func.func @transform_2(%arg0: i32) -> (i32, i32, i32) {
    %c0_i32 = arith.constant 0 : i32
    %c0_i32_0 = arith.constant 0 : i32
    %c0_i32_1 = arith.constant 0 : i32
    %c0_i32_2 = arith.constant 0 : i32
    return %c0_i32, %c0_i32_0, %c0_i32_1 : i32, i32, i32
  }
  func.func @transform_3(%arg0: i32) -> (i32, i32) {
    %c0_i32 = arith.constant 0 : i32
    %c0_i32_0 = arith.constant 0 : i32
    %c0_i32_1 = arith.constant 0 : i32
    return %c0_i32, %c0_i32_0 : i32, i32
  }
  func.func @transform_4(%arg0: i32) -> (i32, i32, i32) {
    %c0_i32 = arith.constant 0 : i32
    %c0_i32_0 = arith.constant 0 : i32
    %c0_i32_1 = arith.constant 0 : i32
    return %arg0, %c0_i32, %c0_i32_0 : i32, i32, i32
  }
}

</mosaic_0001>

<llo_original>
// kernel: mixed_5a_forward.1
$region0: #{mixed_5a_forward.1}
  #allocation0 [shape = 'u32[]', space=smem, size = 0x4, offset = 0x4, fixed_abs, tag = 'smem constant byte address 0x4 - core index']
  #allocation1 [shape = 'u32[144,128]{1,0:T(1,128)}', space=vmem, size = 0x12000, scoped, tag = 'internal scratch']
  %s0 = inlined_call_operand.vmem [shape: f32[2,56,576], index: 0, kind: input, shape index: {}]
  %s1 = inlined_call_operand.vmem [shape: f32[2,49,576], index: 1, kind: input, shape index: {}]
  %s2 = inlined_call_operand.vmem [shape: bf16[3,576,192], index: 2, kind: input, shape index: {}]
  %s3 = inlined_call_operand.vmem [shape: f32[1,192], index: 3, kind: input, shape index: {}]
  %s4 = inlined_call_operand.vmem [shape: f32[2,49,384], index: 4, kind: output, shape index: {}]
  %s5 = sld [smem:[#allocation0]]
  $region49: #{mixed_5a_forward.1} parent=0
    _
  %s7 = ssub.s32 1, %s5
  %s8 = scalar_select 0, %s7, %s5
  loop: start=0, step=1, limit=4
  $region2: #{mixed_5a_forward.1} parent=0 // loop_pre_header
    _
  $region3: #{mixed_5a_forward.1} parent=0 // loop_header
    %s10 = sphi 0, %s14
    %p11 = scmp.ge.s32.totalorder %s10, 4
    %s20 = sphi 0, %s22
    %s23 = sphi 0, %s20
    %s24 = sphi 0, %s23
    %s40 = sphi 0, %s24
    %s46 = sphi 0, %s48
    %s49 = sphi 0, %s46
    %s50 = sphi 0, %s49
    %s66 = sphi 0, %s50
    %s70 = sphi 0, %s70
    %s72 = sphi 0, %s70
    %s73 = sphi 0, %s72
    %s87 = sphi 0, %s73
    %s91 = sphi 0, %s91
    %s93 = sphi 0, %s91
    %s94 = sphi 0, %s93
    %s108 = sphi 0, %s94
    %s114 = sphi 0, %s116
    %s117 = sphi 0, %s114
    %s118 = sphi 0, %s117
    %s134 = sphi 0, %s118
  $region4: #{mixed_5a_forward.1} parent=0 // loop_header_branch
    %13 = sbr.rel (%p11) target = $region8
  $region5: #{mixed_5a_forward.1} parent=0 // loop_body
    %s15 = ssub.s32 %s10, 1
    %s16 = ssub.s32 %s10, 2
    %s17 = sadd.s32 %s10, 1
    %s18 = ssub.s32 %s10, %s17
    %p19 = scmp.eq.s32.totalorder %s18, 0
    %s21 = sadd.s32 %s20, 1
    %s22 = scalar_select %p19, %s20, %s21
    %p25 = pneg %p19
    %p26 = scmp.eq.s32.totalorder %s10, 1
    %p27 = por %p25, %p26
    %p28 = scmp.ne.s32.totalorder %s20, %s23
    %p29 = scmp.eq.s32.totalorder %s10, 0
    %p30 = por %p28, %p29
    %p31 = scmp.ne.s32.totalorder %s20, %s23
    %p32 = scmp.eq.s32.totalorder %s15, 1
    %p33 = por %p31, %p32
    %p34 = scmp.ne.s32.totalorder %s23, %s24
    %p35 = scmp.eq.s32.totalorder %s15, 0
    %p36 = por %p34, %p35
    %p37 = scmp.ne.s32.totalorder %s23, %s24
    %p38 = scmp.eq.s32.totalorder %s16, 1
    %p39 = por %p37, %p38
    %p41 = scmp.ne.s32.totalorder %s24, %s40
    %p42 = scmp.eq.s32.totalorder %s16, 0
    %p43 = por %p41, %p42
    %s44 = ssub.s32 %s10, %s17
    %p45 = scmp.eq.s32.totalorder %s44, 0
    %s47 = sadd.s32 %s46, 1
    %s48 = scalar_select %p45, %s46, %s47
    %p51 = pneg %p45
    %p52 = scmp.eq.s32.totalorder %s10, 1
    %p53 = por %p51, %p52
    %p54 = scmp.ne.s32.totalorder %s46, %s49
    %p55 = scmp.eq.s32.totalorder %s10, 0
    %p56 = por %p54, %p55
    %p57 = scmp.ne.s32.totalorder %s46, %s49
    %p58 = scmp.eq.s32.totalorder %s15, 1
    %p59 = por %p57, %p58
    %p60 = scmp.ne.s32.totalorder %s49, %s50
    %p61 = scmp.eq.s32.totalorder %s15, 0
    %p62 = por %p60, %p61
    %p63 = scmp.ne.s32.totalorder %s49, %s50
    %p64 = scmp.eq.s32.totalorder %s16, 1
    %p65 = por %p63, %p64
    %p67 = scmp.ne.s32.totalorder %s50, %s66
    %p68 = scmp.eq.s32.totalorder %s16, 0
    %p69 = por %p67, %p68
    %s71 = sadd.s32 %s70, 1
    %p74 = scmp.eq.s32.totalorder %s10, 1
    %p75 = scmp.ne.s32.totalorder %s70, %s72
    %p76 = scmp.eq.s32.totalorder %s10, 0
    %p77 = por %p75, %p76
    %p78 = scmp.ne.s32.totalorder %s70, %s72
    %p79 = scmp.eq.s32.totalorder %s15, 1
    %p80 = por %p78, %p79
    %p81 = scmp.ne.s32.totalorder %s72, %s73
    %p82 = scmp.eq.s32.totalorder %s15, 0
    %p83 = por %p81, %p82
    %p84 = scmp.ne.s32.totalorder %s72, %s73
    %p85 = scmp.eq.s32.totalorder %s16, 1
    %p86 = por %p84, %p85
    %p88 = scmp.ne.s32.totalorder %s73, %s87
    %p89 = scmp.eq.s32.totalorder %s16, 0
    %p90 = por %p88, %p89
    %s92 = sadd.s32 %s91, 1
    %p95 = scmp.eq.s32.totalorder %s10, 1
    %p96 = scmp.ne.s32.totalorder %s91, %s93
    %p97 = scmp.eq.s32.totalorder %s10, 0
    %p98 = por %p96, %p97
    %p99 = scmp.ne.s32.totalorder %s91, %s93
    %p100 = scmp.eq.s32.totalorder %s15, 1
    %p101 = por %p99, %p100
    %p102 = scmp.ne.s32.totalorder %s93, %s94
    %p103 = scmp.eq.s32.totalorder %s15, 0
    %p104 = por %p102, %p103
    %p105 = scmp.ne.s32.totalorder %s93, %s94
    %p106 = scmp.eq.s32.totalorder %s16, 1
    %p107 = por %p105, %p106
    %p109 = scmp.ne.s32.totalorder %s94, %s108
    %p110 = scmp.eq.s32.totalorder %s16, 0
    %p111 = por %p109, %p110
    %s112 = ssub.s32 %s10, %s17
    %p113 = scmp.eq.s32.totalorder %s112, 0
    %s115 = sadd.s32 %s114, 1
    %s116 = scalar_select %p113, %s114, %s115
    %p119 = pneg %p113
    %p120 = scmp.eq.s32.totalorder %s10, 1
    %p121 = por %p119, %p120
    %p122 = scmp.ne.s32.totalorder %s114, %s117
    %p123 = scmp.eq.s32.totalorder %s10, 0
    %p124 = por %p122, %p123
    %p125 = scmp.ne.s32.totalorder %s114, %s117
    %p126 = scmp.eq.s32.totalorder %s15, 1
    %p127 = por %p125, %p126
    %p128 = scmp.ne.s32.totalorder %s117, %s118
    %p129 = scmp.eq.s32.totalorder %s15, 0
    %p130 = por %p128, %p129
    %p131 = scmp.ne.s32.totalorder %s117, %s118
    %p132 = scmp.eq.s32.totalorder %s16, 1
    %p133 = por %p131, %p132
    %p135 = scmp.ne.s32.totalorder %s118, %s134
    %p136 = scmp.eq.s32.totalorder %s16, 0
    %p137 = por %p135, %p136
    %p138 = scmp.le.s32.totalorder 1, %s10
    %p139 = scmp.lt.s32.totalorder %s10, 3
    %p140 = pnand %p138, %p139
    %p141 = pneg %p140
    // Predicated region
    $region9: #{mixed_5a_forward.1} parent=5 // pred_check
      _
    $region10: #{mixed_5a_forward.1} parent=5 // pred_check_branch
      %143 = sbr.rel (%p140) target = $region12
    $region11: #{mixed_5a_forward.1} parent=5 // pred_region
      %s144 = ssub.s32 %s10, 1
      // Predicated region
      $region13: #{mixed_5a_forward.1} parent=11 // pred_check
        %p145 = pneg %p83
      $region14: #{mixed_5a_forward.1} parent=11 // pred_check_branch
        %147 = sbr.rel (%p145) target = $region16
      $region15: #{mixed_5a_forward.1} parent=11 // pred_region
        _
      $region16: #{mixed_5a_forward.1} parent=11 // pred_fallthru
        _
      // Predicated region
      $region17: #{mixed_5a_forward.1} parent=11 // pred_check
        %p148 = pneg %p104
      $region18: #{mixed_5a_forward.1} parent=11 // pred_check_branch
        %150 = sbr.rel (%p148) target = $region20
      $region19: #{mixed_5a_forward.1} parent=11 // pred_region
        _
      $region20: #{mixed_5a_forward.1} parent=11 // pred_fallthru
        _
    $region12: #{mixed_5a_forward.1} parent=5 // pred_fallthru
      _
    %p151 = scmp.lt.s32.totalorder %s10, 2
    // Predicated region
    $region21: #{mixed_5a_forward.1} parent=5 // pred_check
      %p152 = pneg %p151
    $region22: #{mixed_5a_forward.1} parent=5 // pred_check_branch
      %154 = sbr.rel (%p152) target = $region24
    $region23: #{mixed_5a_forward.1} parent=5 // pred_region
      // Predicated region
      $region25: #{mixed_5a_forward.1} parent=23 // pred_check
        %p155 = pneg %p30
      $region26: #{mixed_5a_forward.1} parent=23 // pred_check_branch
        %157 = sbr.rel (%p155) target = $region28
      $region27: #{mixed_5a_forward.1} parent=23 // pred_region
        %p158 = scmp.lt.s32.totalorder %s10, 1
        %s159 = scalar_select %p158, %s10, 1
        %s160 = smul.addr %s159, 35
        %s161 = smul.addr %s160, 8
        %s162 = scalar_lea.vmem %s0, %s161
      $region28: #{mixed_5a_forward.1} parent=23 // pred_fallthru
        _
      // Predicated region
      $region29: #{mixed_5a_forward.1} parent=23 // pred_check
        %p163 = pneg %p56
      $region30: #{mixed_5a_forward.1} parent=23 // pred_check_branch
        %165 = sbr.rel (%p163) target = $region32
      $region31: #{mixed_5a_forward.1} parent=23 // pred_region
        %p166 = scmp.lt.s32.totalorder %s10, 1
        %s167 = scalar_select %p166, %s10, 1
        %s168 = smul.addr %s167, 35
        %s169 = smul.addr %s168, 8
        %s170 = scalar_lea.vmem %s1, %s169
      $region32: #{mixed_5a_forward.1} parent=23 // pred_fallthru
        _
    $region24: #{mixed_5a_forward.1} parent=5 // pred_fallthru
      _
    %p171 = scmp.le.s32.totalorder 1, %s10
    %p172 = scmp.lt.s32.totalorder %s10, 3
    %p173 = pnand %p171, %p172
    %p174 = pneg %p173
    // Predicated region
    $region33: #{mixed_5a_forward.1} parent=5 // pred_check
      _
    $region34: #{mixed_5a_forward.1} parent=5 // pred_check_branch
      %176 = sbr.rel (%p173) target = $region36
    $region35: #{mixed_5a_forward.1} parent=5 // pred_region
      %s177 = ssub.s32 %s10, 1
      %p178 = scmp.lt.s32.totalorder %s15, 1
      %s179 = scalar_select %p178, %s15, 1
      %s180 = smul.addr %s179, 35
      %s181 = smul.addr %s180, 8
      %s182 = scalar_lea.vmem %s0, %s181
      %p183 = pneg %p36
      %p184 = pneg %p33
      %p185 = scmp.lt.s32.totalorder %s15, 1
      %s186 = scalar_select %p185, %s15, 1
      %s187 = smul.addr %s186, 35
      %s188 = smul.addr %s187, 8
      %s189 = scalar_lea.vmem %s1, %s188
      %p190 = pneg %p62
      %p191 = pneg %p59
      %p192 = pneg %p83
      %p193 = pneg %p80
      %p194 = pneg %p104
      %p195 = pneg %p101
      %p196 = pneg %p130
      %p197 = pneg %p127
      %p198 = scmp.lt.s32.totalorder %s15, 1
      %s199 = scalar_select %p198, %s15, 1
      %s200 = smul.addr %s199, 21
      %s201 = smul.addr %s200, 8
      %s202 = scalar_lea.vmem %s4, %s201
      %p203 = scmp.lt.s32.totalorder %s15, 1
      %s204 = scalar_select %p203, %s15, 1
      %s205 = smul.addr %s204, 35
      %s206 = smul.addr %s205, 8
      %s207 = scalar_lea.vmem %s0, %s206
      %p208 = scmp.lt.s32.totalorder %s15, 1
      %s209 = scalar_select %p208, %s15, 1
      %s210 = smul.addr %s209, 35
      %s211 = smul.addr %s210, 8
      %s212 = scalar_lea.vmem %s1, %s211
      %p213 = scmp.lt.s32.totalorder %s15, 1
      %s214 = scalar_select %p213, %s15, 1
      %s215 = smul.addr %s214, 21
      %s216 = smul.addr %s215, 8
      %s217 = scalar_lea.vmem %s4, %s216
      %v219 = vld [vmem:[%s207] sm:$0xff]
      %v220 = vld [vmem:[%s207 + $0x8] sm:$0xff]
      %v221 = vld [vmem:[%s207 + $0x10] sm:$0xff]
      %v222 = vld [vmem:[%s207 + $0x18] sm:$0xff]
      %v223 = vld [vmem:[%s207 + $0x20] sm:$0xff]
      %v224 = vld [vmem:[%s207 + $0x28] sm:$0xff]
      %v225 = vld [vmem:[%s207 + $0x30] sm:$0xff]
      %v226 = vld [vmem:[%s207 + $0x38] sm:$0xff]
      %v227 = vld [vmem:[%s207 + $0x40] sm:$0xff]
      %v228 = vld [vmem:[%s207 + $0x48] sm:$0xff]
      %v229 = vld [vmem:[%s207 + $0x50] sm:$0xff]
      %v230 = vld [vmem:[%s207 + $0x58] sm:$0xff]
      %v231 = vld [vmem:[%s207 + $0x60] sm:$0xff]
      %v232 = vld [vmem:[%s207 + $0x68] sm:$0xff]
      %v233 = vld [vmem:[%s207 + $0x70] sm:$0xff]
      %v234 = vld [vmem:[%s207 + $0x78] sm:$0xff]
      %v235 = vld [vmem:[%s207 + $0x80] sm:$0xff]
      %v236 = vld [vmem:[%s207 + $0x88] sm:$0xff]
      %v237 = vld [vmem:[%s207 + $0x90] sm:$0xff]
      %v238 = vld [vmem:[%s207 + $0x98] sm:$0xff]
      %v239 = vld [vmem:[%s207 + $0xa0] sm:$0xff]
      %v240 = vld [vmem:[%s207 + $0xa8] sm:$0xff]
      %v241 = vld [vmem:[%s207 + $0xb0] sm:$0xff]
      %v242 = vld [vmem:[%s207 + $0xb8] sm:$0xff]
      %v243 = vld [vmem:[%s207 + $0xc0] sm:$0xff]
      %v244 = vld [vmem:[%s207 + $0xc8] sm:$0xff]
      %v245 = vld [vmem:[%s207 + $0xd0] sm:$0xff]
      %v246 = vld [vmem:[%s207 + $0xd8] sm:$0xff]
      %v247 = vld [vmem:[%s207 + $0xe0] sm:$0xff]
      %v248 = vld [vmem:[%s207 + $0xe8] sm:$0xff]
      %v249 = vld [vmem:[%s207 + $0xf0] sm:$0x1]
      %v250 = vld [vmem:[%s207 + $0xf8] sm:$0x1]
      %v251 = vld [vmem:[%s207 + $0x100] sm:$0x1]
      %v252 = vld [vmem:[%s207 + $0x108] sm:$0x1]
      %v253 = vld [vmem:[%s207 + $0x110] sm:$0x1]
      %v254 = vld [vmem:[%s212] sm:$0xff]
      %v255 = vld [vmem:[%s212 + $0x8] sm:$0xff]
      %v256 = vld [vmem:[%s212 + $0x10] sm:$0xff]
      %v257 = vld [vmem:[%s212 + $0x18] sm:$0xff]
      %v258 = vld [vmem:[%s212 + $0x20] sm:$0xff]
      %v259 = vld [vmem:[%s212 + $0x28] sm:$0xff]
      %v260 = vld [vmem:[%s212 + $0x30] sm:$0xff]
      %v261 = vld [vmem:[%s212 + $0x38] sm:$0xff]
      %v262 = vld [vmem:[%s212 + $0x40] sm:$0xff]
      %v263 = vld [vmem:[%s212 + $0x48] sm:$0xff]
      %v264 = vld [vmem:[%s212 + $0x50] sm:$0xff]
      %v265 = vld [vmem:[%s212 + $0x58] sm:$0xff]
      %v266 = vld [vmem:[%s212 + $0x60] sm:$0xff]
      %v267 = vld [vmem:[%s212 + $0x68] sm:$0xff]
      %v268 = vld [vmem:[%s212 + $0x70] sm:$0xff]
      %v269 = vld [vmem:[%s212 + $0x78] sm:$0xff]
      %v270 = vld [vmem:[%s212 + $0x80] sm:$0xff]
      %v271 = vld [vmem:[%s212 + $0x88] sm:$0xff]
      %v272 = vld [vmem:[%s212 + $0x90] sm:$0xff]
      %v273 = vld [vmem:[%s212 + $0x98] sm:$0xff]
      %v274 = vld [vmem:[%s212 + $0xa0] sm:$0xff]
      %v275 = vld [vmem:[%s212 + $0xa8] sm:$0xff]
      %v276 = vld [vmem:[%s212 + $0xb0] sm:$0xff]
      %v277 = vld [vmem:[%s212 + $0xb8] sm:$0xff]
      %v278 = vld [vmem:[%s212 + $0xc0] sm:$0xff]
      %v279 = vld [vmem:[%s212 + $0xc8] sm:$0xff]
      %v280 = vld [vmem:[%s212 + $0xd0] sm:$0xff]
      %v281 = vld [vmem:[%s212 + $0xd8] sm:$0xff]
      %v282 = vld [vmem:[%s212 + $0xe0] sm:$0xff]
      %v283 = vld [vmem:[%s212 + $0xe8] sm:$0xff]
      %v284 = vld [vmem:[%s212 + $0xf0] sm:$0x1]
      %v285 = vld [vmem:[%s212 + $0xf8] sm:$0x1]
      %v286 = vld [vmem:[%s212 + $0x100] sm:$0x1]
      %v287 = vld [vmem:[%s212 + $0x108] sm:$0x1]
      %v288 = vld [vmem:[%s212 + $0x110] sm:$0x1]
      %v289 = vld [vmem:[%s207] sm:$0x80]
      %v290 = vld [vmem:[%s207 + $0x8] sm:$0x80]
      %v291 = vld [vmem:[%s207 + $0x10] sm:$0x80]
      %v292 = vld [vmem:[%s207 + $0x18] sm:$0x80]
      %v293 = vld [vmem:[%s207 + $0x20] sm:$0x80]
      %v294 = vld [vmem:[%s207 + $0xf0] sm:$0xff]
      %v295 = vld [vmem:[%s207 + $0xf8] sm:$0xff]
      %v296 = vld [vmem:[%s207 + $0x100] sm:$0xff]
      %v297 = vld [vmem:[%s207 + $0x108] sm:$0xff]
      %v298 = vld [vmem:[%s207 + $0x110] sm:$0xff]
      %v299 = vpack.c.bf16 %v224, %v219
      %v300 = vpack.c.bf16 %v225, %v220
      %v301 = vpack.c.bf16 %v226, %v221
      %v302 = vpack.c.bf16 %v227, %v222
      %v303 = vpack.c.bf16 %v228, %v223
      %v304 = vpack.c.bf16 %v234, %v229
      %v305 = vpack.c.bf16 %v235, %v230
      %v306 = vpack.c.bf16 %v236, %v231
      %v307 = vpack.c.bf16 %v237, %v232
      %v308 = vpack.c.bf16 %v238, %v233
      %v309 = vpack.c.bf16 %v244, %v239
      %v310 = vpack.c.bf16 %v245, %v240
      %v311 = vpack.c.bf16 %v246, %v241
      %v312 = vpack.c.bf16 %v247, %v242
      %v313 = vpack.c.bf16 %v248, %v243
      %v314 = vpack.c.bf16 %v249, %v249
      %v315 = vpack.c.bf16 %v250, %v250
      %v316 = vpack.c.bf16 %v251, %v251
      %v317 = vpack.c.bf16 %v252, %v252
      %v318 = vpack.c.bf16 %v253, %v253
      %v319 = vld [vmem:[%s2] sm:$0xff]
      %v320 = vld [vmem:[%s2 + $0x8] sm:$0xff]
      %v321 = vld [vmem:[%s2 + $0x10] sm:$0xff]
      %v322 = vld [vmem:[%s2 + $0x18] sm:$0xff]
      %v323 = vld [vmem:[%s2 + $0x20] sm:$0xff]
      %v324 = vld [vmem:[%s2 + $0x28] sm:$0xff]
      %v325 = vld [vmem:[%s2 + $0x30] sm:$0xff]
      %v326 = vld [vmem:[%s2 + $0x38] sm:$0xff]
      %v327 = vld [vmem:[%s2 + $0x40] sm:$0xff]
      %v328 = vld [vmem:[%s2 + $0x48] sm:$0xff]
      %v329 = vld [vmem:[%s2 + $0x50] sm:$0xff]
      %v330 = vld [vmem:[%s2 + $0x58] sm:$0xff]
      %v331 = vld [vmem:[%s2 + $0x60] sm:$0xff]
      %v332 = vld [vmem:[%s2 + $0x68] sm:$0xff]
      %v333 = vld [vmem:[%s2 + $0x70] sm:$0xff]
      %v334 = vld [vmem:[%s2 + $0x78] sm:$0xff]
      %v335 = vld [vmem:[%s2 + $0x80] sm:$0xff]
      %v336 = vld [vmem:[%s2 + $0x88] sm:$0xff]
      %v337 = vld [vmem:[%s2 + $0x90] sm:$0xff]
      %v338 = vld [vmem:[%s2 + $0x98] sm:$0xff]
      %v339 = vld [vmem:[%s2 + $0xa0] sm:$0xff]
      %v340 = vld [vmem:[%s2 + $0xa8] sm:$0xff]
      %v341 = vld [vmem:[%s2 + $0xb0] sm:$0xff]
      %v342 = vld [vmem:[%s2 + $0xb8] sm:$0xff]
      %v343 = vld [vmem:[%s2 + $0xc0] sm:$0xff]
      %v344 = vld [vmem:[%s2 + $0xc8] sm:$0xff]
      %v345 = vld [vmem:[%s2 + $0xd0] sm:$0xff]
      %v346 = vld [vmem:[%s2 + $0xd8] sm:$0xff]
      %v347 = vld [vmem:[%s2 + $0xe0] sm:$0xff]
      %v348 = vld [vmem:[%s2 + $0xe8] sm:$0xff]
      %v349 = vld [vmem:[%s2 + $0xf0] sm:$0xff]
      %v350 = vld [vmem:[%s2 + $0xf8] sm:$0xff]
      %v351 = vld [vmem:[%s2 + $0x100] sm:$0xff]
      %v352 = vld [vmem:[%s2 + $0x108] sm:$0xff]
      %v353 = vld [vmem:[%s2 + $0x110] sm:$0xff]
      %v354 = vld [vmem:[%s2 + $0x118] sm:$0xff]
      %v355 = vld [vmem:[%s2 + $0x120] sm:$0xff]
      %v356 = vld [vmem:[%s2 + $0x128] sm:$0xff]
      %v357 = vld [vmem:[%s2 + $0x130] sm:$0xff]
      %v358 = vld [vmem:[%s2 + $0x138] sm:$0xff]
      %v359 = vld [vmem:[%s2 + $0x140] sm:$0xff]
      %v360 = vld [vmem:[%s2 + $0x148] sm:$0xff]
      %v361 = vld [vmem:[%s2 + $0x150] sm:$0xff]
      %v362 = vld [vmem:[%s2 + $0x158] sm:$0xff]
      %v363 = vld [vmem:[%s2 + $0x160] sm:$0xff]
      %v364 = vld [vmem:[%s2 + $0x168] sm:$0xff]
      %v365 = vld [vmem:[%s2 + $0x170] sm:$0xff]
      %v366 = vld [vmem:[%s2 + $0x178] sm:$0xff]
      %v367 = vld [vmem:[%s2 + $0x180] sm:$0xff]
      %v368 = vld [vmem:[%s2 + $0x188] sm:$0xff]
      %v369 = vld [vmem:[%s2 + $0x190] sm:$0xff]
      %v370 = vld [vmem:[%s2 + $0x198] sm:$0xff]
      %v371 = vld [vmem:[%s2 + $0x1a0] sm:$0xff]
      %v372 = vld [vmem:[%s2 + $0x1a8] sm:$0xff]
      %v373 = vld [vmem:[%s2 + $0x1b0] sm:$0xff]
      %v374 = vld [vmem:[%s2 + $0x1b8] sm:$0xff]
      %v375 = vld [vmem:[%s2 + $0x1c0] sm:$0xff]
      %v376 = vld [vmem:[%s2 + $0x1c8] sm:$0xff]
      %v377 = vld [vmem:[%s2 + $0x1d0] sm:$0xff]
      %v378 = vld [vmem:[%s2 + $0x1d8] sm:$0xff]
      %v379 = vld [vmem:[%s2 + $0x1e0] sm:$0xff]
      %v380 = vld [vmem:[%s2 + $0x1e8] sm:$0xff]
      %v381 = vld [vmem:[%s2 + $0x1f0] sm:$0xff]
      %v382 = vld [vmem:[%s2 + $0x1f8] sm:$0xff]
      %v383 = vld [vmem:[%s2 + $0x200] sm:$0xff]
      %v384 = vld [vmem:[%s2 + $0x208] sm:$0xff]
      %v385 = vld [vmem:[%s2 + $0x210] sm:$0xff]
      %v386 = vld [vmem:[%s2 + $0x218] sm:$0xff]
      %v387 = vld [vmem:[%s2 + $0x220] sm:$0xff]
      %v388 = vld [vmem:[%s2 + $0x228] sm:$0xff]
      %v389 = vld [vmem:[%s2 + $0x230] sm:$0xff]
      %v390 = vld [vmem:[%s2 + $0x238] sm:$0xff]
      %v391 = vpack.c.bf16 %v259, %v254
      %v392 = vpack.c.bf16 %v260, %v255
      %v393 = vpack.c.bf16 %v261, %v256
      %v394 = vpack.c.bf16 %v262, %v257
      %v395 = vpack.c.bf16 %v263, %v258
      %v396 = vpack.c.bf16 %v269, %v264
      %v397 = vpack.c.bf16 %v270, %v265
      %v398 = vpack.c.bf16 %v271, %v266
      %v399 = vpack.c.bf16 %v272, %v267
      %v400 = vpack.c.bf16 %v273, %v268
      %v401 = vpack.c.bf16 %v279, %v274
      %v402 = vpack.c.bf16 %v280, %v275
      %v403 = vpack.c.bf16 %v281, %v276
      %v404 = vpack.c.bf16 %v282, %v277
      %v405 = vpack.c.bf16 %v283, %v278
      %v406 = vpack.c.bf16 %v284, %v284
      %v407 = vpack.c.bf16 %v285, %v285
      %v408 = vpack.c.bf16 %v286, %v286
      %v409 = vpack.c.bf16 %v287, %v287
      %v410 = vpack.c.bf16 %v288, %v288
      %s411 = scalar_lea.vmem %s2, 576
      %v412 = vld [vmem:[%s411] sm:$0xff]
      %v413 = vld [vmem:[%s411 + $0x8] sm:$0xff]
      %v414 = vld [vmem:[%s411 + $0x10] sm:$0xff]
      %v415 = vld [vmem:[%s411 + $0x18] sm:$0xff]
      %v416 = vld [vmem:[%s411 + $0x20] sm:$0xff]
      %v417 = vld [vmem:[%s411 + $0x28] sm:$0xff]
      %v418 = vld [vmem:[%s411 + $0x30] sm:$0xff]
      %v419 = vld [vmem:[%s411 + $0x38] sm:$0xff]
      %v420 = vld [vmem:[%s411 + $0x40] sm:$0xff]
      %v421 = vld [vmem:[%s411 + $0x48] sm:$0xff]
      %v422 = vld [vmem:[%s411 + $0x50] sm:$0xff]
      %v423 = vld [vmem:[%s411 + $0x58] sm:$0xff]
      %v424 = vld [vmem:[%s411 + $0x60] sm:$0xff]
      %v425 = vld [vmem:[%s411 + $0x68] sm:$0xff]
      %v426 = vld [vmem:[%s411 + $0x70] sm:$0xff]
      %v427 = vld [vmem:[%s411 + $0x78] sm:$0xff]
      %v428 = vld [vmem:[%s411 + $0x80] sm:$0xff]
      %v429 = vld [vmem:[%s411 + $0x88] sm:$0xff]
      %v430 = vld [vmem:[%s411 + $0x90] sm:$0xff]
      %v431 = vld [vmem:[%s411 + $0x98] sm:$0xff]
      %v432 = vld [vmem:[%s411 + $0xa0] sm:$0xff]
      %v433 = vld [vmem:[%s411 + $0xa8] sm:$0xff]
      %v434 = vld [vmem:[%s411 + $0xb0] sm:$0xff]
      %v435 = vld [vmem:[%s411 + $0xb8] sm:$0xff]
      %v436 = vld [vmem:[%s411 + $0xc0] sm:$0xff]
      %v437 = vld [vmem:[%s411 + $0xc8] sm:$0xff]
      %v438 = vld [vmem:[%s411 + $0xd0] sm:$0xff]
      %v439 = vld [vmem:[%s411 + $0xd8] sm:$0xff]
      %v440 = vld [vmem:[%s411 + $0xe0] sm:$0xff]
      %v441 = vld [vmem:[%s411 + $0xe8] sm:$0xff]
      %v442 = vld [vmem:[%s411 + $0xf0] sm:$0xff]
      %v443 = vld [vmem:[%s411 + $0xf8] sm:$0xff]
      %v444 = vld [vmem:[%s411 + $0x100] sm:$0xff]
      %v445 = vld [vmem:[%s411 + $0x108] sm:$0xff]
      %v446 = vld [vmem:[%s411 + $0x110] sm:$0xff]
      %v447 = vld [vmem:[%s411 + $0x118] sm:$0xff]
      %v448 = vld [vmem:[%s411 + $0x120] sm:$0xff]
      %v449 = vld [vmem:[%s411 + $0x128] sm:$0xff]
      %v450 = vld [vmem:[%s411 + $0x130] sm:$0xff]
      %v451 = vld [vmem:[%s411 + $0x138] sm:$0xff]
      %v452 = vld [vmem:[%s411 + $0x140] sm:$0xff]
      %v453 = vld [vmem:[%s411 + $0x148] sm:$0xff]
      %v454 = vld [vmem:[%s411 + $0x150] sm:$0xff]
      %v455 = vld [vmem:[%s411 + $0x158] sm:$0xff]
      %v456 = vld [vmem:[%s411 + $0x160] sm:$0xff]
      %v457 = vld [vmem:[%s411 + $0x168] sm:$0xff]
      %v458 = vld [vmem:[%s411 + $0x170] sm:$0xff]
      %v459 = vld [vmem:[%s411 + $0x178] sm:$0xff]
      %v460 = vld [vmem:[%s411 + $0x180] sm:$0xff]
      %v461 = vld [vmem:[%s411 + $0x188] sm:$0xff]
      %v462 = vld [vmem:[%s411 + $0x190] sm:$0xff]
      %v463 = vld [vmem:[%s411 + $0x198] sm:$0xff]
      %v464 = vld [vmem:[%s411 + $0x1a0] sm:$0xff]
      %v465 = vld [vmem:[%s411 + $0x1a8] sm:$0xff]
      %v466 = vld [vmem:[%s411 + $0x1b0] sm:$0xff]
      %v467 = vld [vmem:[%s411 + $0x1b8] sm:$0xff]
      %v468 = vld [vmem:[%s411 + $0x1c0] sm:$0xff]
      %v469 = vld [vmem:[%s411 + $0x1c8] sm:$0xff]
      %v470 = vld [vmem:[%s411 + $0x1d0] sm:$0xff]
      %v471 = vld [vmem:[%s411 + $0x1d8] sm:$0xff]
      %v472 = vld [vmem:[%s411 + $0x1e0] sm:$0xff]
      %v473 = vld [vmem:[%s411 + $0x1e8] sm:$0xff]
      %v474 = vld [vmem:[%s411 + $0x1f0] sm:$0xff]
      %v475 = vld [vmem:[%s411 + $0x1f8] sm:$0xff]
      %v476 = vld [vmem:[%s411 + $0x200] sm:$0xff]
      %v477 = vld [vmem:[%s411 + $0x208] sm:$0xff]
      %v478 = vld [vmem:[%s411 + $0x210] sm:$0xff]
      %v479 = vld [vmem:[%s411 + $0x218] sm:$0xff]
      %v480 = vld [vmem:[%s411 + $0x220] sm:$0xff]
      %v481 = vld [vmem:[%s411 + $0x228] sm:$0xff]
      %v482 = vld [vmem:[%s411 + $0x230] sm:$0xff]
      %v483 = vld [vmem:[%s411 + $0x238] sm:$0xff]
      %v556 = vunpack.c.l.b16 %v412
      %v557 = vunpack.c.h.b16 %v412
      %v558 = vunpack.c.l.b16 %v413
      %v559 = vunpack.c.h.b16 %v413
      %v560 = vunpack.c.l.b16 %v414
      %v561 = vunpack.c.h.b16 %v414
      %v562 = vunpack.c.l.b16 %v415
      %v563 = vunpack.c.h.b16 %v415
      %v564 = vunpack.c.l.b16 %v416
      %v565 = vunpack.c.h.b16 %v416
      %v566 = vunpack.c.l.b16 %v417
      %v567 = vunpack.c.h.b16 %v417
      %v568 = vunpack.c.l.b16 %v418
      %v569 = vunpack.c.h.b16 %v418
      %v570 = vunpack.c.l.b16 %v419
      %v571 = vunpack.c.h.b16 %v419
      %v572 = vunpack.c.l.b16 %v420
      %v573 = vunpack.c.h.b16 %v420
      %v574 = vunpack.c.l.b16 %v421
      %v575 = vunpack.c.h.b16 %v421
      %v576 = vunpack.c.l.b16 %v422
      %v577 = vunpack.c.h.b16 %v422
      %v578 = vunpack.c.l.b16 %v423
      %v579 = vunpack.c.h.b16 %v423
      %v580 = vunpack.c.l.b16 %v424
      %v581 = vunpack.c.h.b16 %v424
      %v582 = vunpack.c.l.b16 %v425
      %v583 = vunpack.c.h.b16 %v425
      %v584 = vunpack.c.l.b16 %v426
      %v585 = vunpack.c.h.b16 %v426
      %v586 = vunpack.c.l.b16 %v427
      %v587 = vunpack.c.h.b16 %v427
      %v588 = vunpack.c.l.b16 %v428
      %v589 = vunpack.c.h.b16 %v428
      %v590 = vunpack.c.l.b16 %v429
      %v591 = vunpack.c.h.b16 %v429
      %v592 = vunpack.c.l.b16 %v430
      %v593 = vunpack.c.h.b16 %v430
      %v594 = vunpack.c.l.b16 %v431
      %v595 = vunpack.c.h.b16 %v431
      %v596 = vunpack.c.l.b16 %v432
      %v597 = vunpack.c.h.b16 %v432
      %v598 = vunpack.c.l.b16 %v433
      %v599 = vunpack.c.h.b16 %v433
      %v600 = vunpack.c.l.b16 %v434
      %v601 = vunpack.c.h.b16 %v434
      %v602 = vunpack.c.l.b16 %v435
      %v603 = vunpack.c.h.b16 %v435
      %v604 = vunpack.c.l.b16 %v436
      %v605 = vunpack.c.h.b16 %v436
      %v606 = vunpack.c.l.b16 %v437
      %v607 = vunpack.c.h.b16 %v437
      %v608 = vunpack.c.l.b16 %v438
      %v609 = vunpack.c.h.b16 %v438
      %v610 = vunpack.c.l.b16 %v439
      %v611 = vunpack.c.h.b16 %v439
      %v612 = vunpack.c.l.b16 %v440
      %v613 = vunpack.c.h.b16 %v440
      %v614 = vunpack.c.l.b16 %v441
      %v615 = vunpack.c.h.b16 %v441
      %v616 = vunpack.c.l.b16 %v442
      %v617 = vunpack.c.h.b16 %v442
      %v618 = vunpack.c.l.b16 %v443
      %v619 = vunpack.c.h.b16 %v443
      %v620 = vunpack.c.l.b16 %v444
      %v621 = vunpack.c.h.b16 %v444
      %v622 = vunpack.c.l.b16 %v445
      %v623 = vunpack.c.h.b16 %v445
      %v624 = vunpack.c.l.b16 %v446
      %v625 = vunpack.c.h.b16 %v446
      %v626 = vunpack.c.l.b16 %v447
      %v627 = vunpack.c.h.b16 %v447
      %v628 = vunpack.c.l.b16 %v448
      %v629 = vunpack.c.h.b16 %v448
      %v630 = vunpack.c.l.b16 %v449
      %v631 = vunpack.c.h.b16 %v449
      %v632 = vunpack.c.l.b16 %v450
      %v633 = vunpack.c.h.b16 %v450
      %v634 = vunpack.c.l.b16 %v451
      %v635 = vunpack.c.h.b16 %v451
      %v636 = vunpack.c.l.b16 %v452
      %v637 = vunpack.c.h.b16 %v452
      %v638 = vunpack.c.l.b16 %v453
      %v639 = vunpack.c.h.b16 %v453
      %v640 = vunpack.c.l.b16 %v454
      %v641 = vunpack.c.h.b16 %v454
      %v642 = vunpack.c.l.b16 %v455
      %v643 = vunpack.c.h.b16 %v455
      %v644 = vunpack.c.l.b16 %v456
      %v645 = vunpack.c.h.b16 %v456
      %v646 = vunpack.c.l.b16 %v457
      %v647 = vunpack.c.h.b16 %v457
      %v648 = vunpack.c.l.b16 %v458
      %v649 = vunpack.c.h.b16 %v458
      %v650 = vunpack.c.l.b16 %v459
      %v651 = vunpack.c.h.b16 %v459
      %v652 = vunpack.c.l.b16 %v460
      %v653 = vunpack.c.h.b16 %v460
      %v654 = vunpack.c.l.b16 %v461
      %v655 = vunpack.c.h.b16 %v461
      %v656 = vunpack.c.l.b16 %v462
      %v657 = vunpack.c.h.b16 %v462
      %v658 = vunpack.c.l.b16 %v463
      %v659 = vunpack.c.h.b16 %v463
      %v660 = vunpack.c.l.b16 %v464
      %v661 = vunpack.c.h.b16 %v464
      %v662 = vunpack.c.l.b16 %v465
      %v663 = vunpack.c.h.b16 %v465
      %v664 = vunpack.c.l.b16 %v466
      %v665 = vunpack.c.h.b16 %v466
      %v666 = vunpack.c.l.b16 %v467
      %v667 = vunpack.c.h.b16 %v467
      %v668 = vunpack.c.l.b16 %v468
      %v669 = vunpack.c.h.b16 %v468
      %v670 = vunpack.c.l.b16 %v469
      %v671 = vunpack.c.h.b16 %v469
      %v672 = vunpack.c.l.b16 %v470
      %v673 = vunpack.c.h.b16 %v470
      %v674 = vunpack.c.l.b16 %v471
      %v675 = vunpack.c.h.b16 %v471
      %v676 = vunpack.c.l.b16 %v472
      %v677 = vunpack.c.h.b16 %v472
      %v678 = vunpack.c.l.b16 %v473
      %v679 = vunpack.c.h.b16 %v473
      %v680 = vunpack.c.l.b16 %v474
      %v681 = vunpack.c.h.b16 %v474
      %v682 = vunpack.c.l.b16 %v475
      %v683 = vunpack.c.h.b16 %v475
      %v684 = vunpack.c.l.b16 %v476
      %v685 = vunpack.c.h.b16 %v476
      %v686 = vunpack.c.l.b16 %v477
      %v687 = vunpack.c.h.b16 %v477
      %v688 = vunpack.c.l.b16 %v478
      %v689 = vunpack.c.h.b16 %v478
      %v690 = vunpack.c.l.b16 %v479
      %v691 = vunpack.c.h.b16 %v479
      %v692 = vunpack.c.l.b16 %v480
      %v693 = vunpack.c.h.b16 %v480
      %v694 = vunpack.c.l.b16 %v481
      %v695 = vunpack.c.h.b16 %v481
      %v696 = vunpack.c.l.b16 %v482
      %v697 = vunpack.c.h.b16 %v482
      %v698 = vunpack.c.l.b16 %v483
      %v699 = vunpack.c.h.b16 %v483
      %v700 = vpack.c.b16 %v558, %v556
      %v701 = vpack.c.b16 %v559, %v557
      %v702 = vpack.c.b16 %v562, %v560
      %v703 = vpack.c.b16 %v563, %v561
      %v704 = vpack.c.b16 %v566, %v564
      %v705 = vpack.c.b16 %v567, %v565
      %v706 = vpack.c.b16 %v570, %v568
      %v707 = vpack.c.b16 %v571, %v569
      %v708 = vpack.c.b16 %v574, %v572
      %v709 = vpack.c.b16 %v575, %v573
      %v710 = vpack.c.b16 %v578, %v576
      %v711 = vpack.c.b16 %v579, %v577
      %v712 = vpack.c.b16 %v582, %v580
      %v713 = vpack.c.b16 %v583, %v581
      %v714 = vpack.c.b16 %v586, %v584
      %v715 = vpack.c.b16 %v587, %v585
      %v716 = vpack.c.b16 %v590, %v588
      %v717 = vpack.c.b16 %v591, %v589
      %v718 = vpack.c.b16 %v594, %v592
      %v719 = vpack.c.b16 %v595, %v593
      %v720 = vpack.c.b16 %v598, %v596
      %v721 = vpack.c.b16 %v599, %v597
      %v722 = vpack.c.b16 %v602, %v600
      %v723 = vpack.c.b16 %v603, %v601
      %v724 = vpack.c.b16 %v606, %v604
      %v725 = vpack.c.b16 %v607, %v605
      %v726 = vpack.c.b16 %v610, %v608
      %v727 = vpack.c.b16 %v611, %v609
      %v728 = vpack.c.b16 %v614, %v612
      %v729 = vpack.c.b16 %v615, %v613
      %v730 = vpack.c.b16 %v618, %v616
      %v731 = vpack.c.b16 %v619, %v617
      %v732 = vpack.c.b16 %v622, %v620
      %v733 = vpack.c.b16 %v623, %v621
      %v734 = vpack.c.b16 %v626, %v624
      %v735 = vpack.c.b16 %v627, %v625
      %v736 = vpack.c.b16 %v630, %v628
      %v737 = vpack.c.b16 %v631, %v629
      %v738 = vpack.c.b16 %v634, %v632
      %v739 = vpack.c.b16 %v635, %v633
      %v740 = vpack.c.b16 %v638, %v636
      %v741 = vpack.c.b16 %v639, %v637
      %v742 = vpack.c.b16 %v642, %v640
      %v743 = vpack.c.b16 %v643, %v641
      %v744 = vpack.c.b16 %v646, %v644
      %v745 = vpack.c.b16 %v647, %v645
      %v746 = vpack.c.b16 %v650, %v648
      %v747 = vpack.c.b16 %v651, %v649
      %v748 = vpack.c.b16 %v654, %v652
      %v749 = vpack.c.b16 %v655, %v653
      %v750 = vpack.c.b16 %v658, %v656
      %v751 = vpack.c.b16 %v659, %v657
      %v752 = vpack.c.b16 %v662, %v660
      %v753 = vpack.c.b16 %v663, %v661
      %v754 = vpack.c.b16 %v666, %v664
      %v755 = vpack.c.b16 %v667, %v665
      %v756 = vpack.c.b16 %v670, %v668
      %v757 = vpack.c.b16 %v671, %v669
      %v758 = vpack.c.b16 %v674, %v672
      %v759 = vpack.c.b16 %v675, %v673
      %v760 = vpack.c.b16 %v678, %v676
      %v761 = vpack.c.b16 %v679, %v677
      %v762 = vpack.c.b16 %v682, %v680
      %v763 = vpack.c.b16 %v683, %v681
      %v764 = vpack.c.b16 %v686, %v684
      %v765 = vpack.c.b16 %v687, %v685
      %v766 = vpack.c.b16 %v690, %v688
      %v767 = vpack.c.b16 %v691, %v689
      %v768 = vpack.c.b16 %v694, %v692
      %v769 = vpack.c.b16 %v695, %v693
      %v770 = vpack.c.b16 %v698, %v696
      %v771 = vpack.c.b16 %v699, %v697
      %vm844 = vcmask 523264
      %v846 = vsel %vm844, %v395, 0
      %v849 = vsel %vm844, %v400, 0
      %v852 = vsel %vm844, %v405, 0
      %v855 = vsel %vm844, %v410, 0
      %857 = vmatprep.subr.bf16.mxu0 %v701
      %858 = vmatpush1.bf16.msra.mxu0 %v700
      %859 = vmatprep.subr.bf16.mxu0 %v703
      %860 = vmatpush1.bf16.msra.mxu0 %v702
      %861 = vmatprep.subr.bf16.mxu0 %v705
      %862 = vmatpush1.bf16.msra.mxu0 %v704
      %863 = vmatprep.subr.bf16.mxu0 %v707
      %864 = vmatpush1.bf16.msra.mxu0 %v706
      %865 = vmatprep.subr.bf16.mxu0 %v709
      %866 = vmatpush1.bf16.msra.mxu0 %v708
      %867 = vmatprep.subr.bf16.mxu0 %v711
      %868 = vmatpush1.bf16.msra.mxu0 %v710
      %869 = vmatprep.subr.bf16.mxu0 %v713
      %870 = vmatpush1.bf16.msra.mxu0 %v712
      %871 = vmatprep.subr.bf16.mxu0 %v715
      %872 = vmatpush1.bf16.msra.mxu0 %v714
      %873 = vmatprep.subr.bf16.mxu0 %v717
      %874 = vmatpush1.bf16.msra.mxu0 %v716
      %875 = vmatprep.subr.bf16.mxu0 %v719
      %876 = vmatpush1.bf16.msra.mxu0 %v718
      %877 = vmatprep.subr.bf16.mxu0 %v721
      %878 = vmatpush1.bf16.msra.mxu0 %v720
      %879 = vmatprep.subr.bf16.mxu0 %v723
      %880 = vmatpush1.bf16.msra.mxu0 %v722
      %881 = vmatprep.subr.bf16.mxu0 %v725
      %882 = vmatpush1.bf16.msra.mxu0 %v724
      %883 = vmatprep.subr.bf16.mxu0 %v727
      %884 = vmatpush1.bf16.msra.mxu0 %v726
      %885 = vmatprep.subr.bf16.mxu0 %v729
      %886 = vmatpush1.bf16.msra.mxu0 %v728
      %887 = vmatprep.subr.bf16.mxu0 %v731
      %888 = vmatpush1.bf16.msra.mxu0 %v730
      %889 = vmatprep.mubr.bf16.mxu0 %v392
      %890 = vmatmul.mubr.bf16.gmra.mrb[0].mxu0 %v391
      %v891 = vpop.f32.mrb[0].mxu0
      %v892 = vadd.f32 0.0, %v891
      %v893 = vpop.f32.mrb[0].mxu0
      %v894 = vadd.f32 0.0, %v893
      %v895 = vpop.f32.mrb[0].mxu0
      %v896 = vadd.f32 0.0, %v895
      %v897 = vpop.f32.mrb[0].mxu0
      %v898 = vadd.f32 0.0, %v897
      %899 = vmatprep.mubr.bf16.mxu0 %v397
      %900 = vmatmul.mubr.bf16.gmra.mrb[0].mxu0 %v396
      %v901 = vpop.f32.mrb[0].mxu0
      %v902 = vadd.f32 0.0, %v901
      %v903 = vpop.f32.mrb[0].mxu0
      %v904 = vadd.f32 0.0, %v903
      %v905 = vpop.f32.mrb[0].mxu0
      %v906 = vadd.f32 0.0, %v905
      %v907 = vpop.f32.mrb[0].mxu0
      %v908 = vadd.f32 0.0, %v907
      %909 = vmatprep.mubr.bf16.mxu0 %v402
      %910 = vmatmul.mubr.bf16.gmra.mrb[0].mxu0 %v401
      %v911 = vpop.f32.mrb[0].mxu0
      %v912 = vadd.f32 0.0, %v911
      %v913 = vpop.f32.mrb[0].mxu0
      %v914 = vadd.f32 0.0, %v913
      %v915 = vpop.f32.mrb[0].mxu0
      %v916 = vadd.f32 0.0, %v915
      %v917 = vpop.f32.mrb[0].mxu0
      %v918 = vadd.f32 0.0, %v917
      %919 = vmatprep.mubr.bf16.mxu0 %v407
      %920 = vmatmul.mubr.bf16.gmra.mrb[0].mxu0 %v406
      %v921 = vpop.f32.mrb[0].mxu0
      %v922 = vadd.f32 0.0, %v921
      %v923 = vpop.f32.mrb[0].mxu0
      %v924 = vadd.f32 0.0, %v923
      %v925 = vpop.f32.mrb[0].mxu0
      %v926 = vpop.f32.mrb[0].mxu0
      %927 = vdwg.mxu0
      %928 = vmatprep.subr.bf16.mxu0 %v733
      %929 = vmatpush1.bf16.msra.mxu0 %v732
      %930 = vmatprep.subr.bf16.mxu0 %v735
      %931 = vmatpush1.bf16.msra.mxu0 %v734
      %932 = vmatprep.subr.bf16.mxu0 %v737
      %933 = vmatpush1.bf16.msra.mxu0 %v736
      %934 = vmatprep.subr.bf16.mxu0 %v739
      %935 = vmatpush1.bf16.msra.mxu0 %v738
      %936 = vmatprep.subr.bf16.mxu0 %v741
      %937 = vmatpush1.bf16.msra.mxu0 %v740
      %938 = vmatprep.subr.bf16.mxu0 %v743
      %939 = vmatpush1.bf16.msra.mxu0 %v742
      %940 = vmatprep.subr.bf16.mxu0 %v745
      %941 = vmatpush1.bf16.msra.mxu0 %v744
      %942 = vmatprep.subr.bf16.mxu0 %v747
      %943 = vmatpush1.bf16.msra.mxu0 %v746
      %944 = vmatprep.subr.bf16.mxu0 %v749
      %945 = vmatpush1.bf16.msra.mxu0 %v748
      %946 = vmatprep.subr.bf16.mxu0 %v751
      %947 = vmatpush1.bf16.msra.mxu0 %v750
      %948 = vmatprep.subr.bf16.mxu0 %v753
      %949 = vmatpush1.bf16.msra.mxu0 %v752
      %950 = vmatprep.subr.bf16.mxu0 %v755
      %951 = vmatpush1.bf16.msra.mxu0 %v754
      %952 = vmatprep.subr.bf16.mxu0 %v757
      %953 = vmatpush1.bf16.msra.mxu0 %v756
      %954 = vmatprep.subr.bf16.mxu0 %v759
      %955 = vmatpush1.bf16.msra.mxu0 %v758
      %956 = vmatprep.subr.bf16.mxu0 %v761
      %957 = vmatpush1.bf16.msra.mxu0 %v760
      %958 = vmatprep.subr.bf16.mxu0 %v763
      %959 = vmatpush1.bf16.msra.mxu0 %v762
      %960 = vmatprep.mubr.bf16.mxu0 %v394
      %961 = vmatmul.mubr.bf16.gmra.mrb[0].mxu0 %v393
      %v962 = vpop.f32.mrb[0].mxu0
      %v963 = vadd.f32 %v892, %v962
      %v964 = vpop.f32.mrb[0].mxu0
      %v965 = vadd.f32 %v894, %v964
      %v966 = vpop.f32.mrb[0].mxu0
      %v967 = vadd.f32 %v896, %v966
      %v968 = vpop.f32.mrb[0].mxu0
      %v969 = vadd.f32 %v898, %v968
      %970 = vmatprep.mubr.bf16.mxu0 %v399
      %971 = vmatmul.mubr.bf16.gmra.mrb[0].mxu0 %v398
      %v972 = vpop.f32.mrb[0].mxu0
      %v973 = vadd.f32 %v902, %v972
      %v974 = vpop.f32.mrb[0].mxu0
      %v975 = vadd.f32 %v904, %v974
      %v976 = vpop.f32.mrb[0].mxu0
      %v977 = vadd.f32 %v906, %v976
      %v978 = vpop.f32.mrb[0].mxu0
      %v979 = vadd.f32 %v908, %v978
      %980 = vmatprep.mubr.bf16.mxu0 %v404
      %981 = vmatmul.mubr.bf16.gmra.mrb[0].mxu0 %v403
      %v982 = vpop.f32.mrb[0].mxu0
      %v983 = vadd.f32 %v912, %v982
      %v984 = vpop.f32.mrb[0].mxu0
      %v985 = vadd.f32 %v914, %v984
      %v986 = vpop.f32.mrb[0].mxu0
      %v987 = vadd.f32 %v916, %v986
      %v988 = vpop.f32.mrb[0].mxu0
      %v989 = vadd.f32 %v918, %v988
      %990 = vmatprep.mubr.bf16.mxu0 %v409
      %991 = vmatmul.mubr.bf16.gmra.mrb[0].mxu0 %v408
      %v992 = vpop.f32.mrb[0].mxu0
      %v993 = vadd.f32 %v922, %v992
      %v994 = vpop.f32.mrb[0].mxu0
      %v995 = vadd.f32 %v924, %v994
      %v996 = vpop.f32.mrb[0].mxu0
      %v997 = vpop.f32.mrb[0].mxu0
      %998 = vdwg.mxu0
      %999 = vmatprep.subr.bf16.mxu0 %v765
      %1000 = vmatpush1.bf16.msra.mxu0 %v764
      %1001 = vmatprep.subr.bf16.mxu0 %v767
      %1002 = vmatpush1.bf16.msra.mxu0 %v766
      %1003 = vmatprep.subr.bf16.mxu0 %v769
      %1004 = vmatpush1.bf16.msra.mxu0 %v768
      %1005 = vmatprep.subr.bf16.mxu0 %v771
      %1006 = vmatpush1.bf16.msra.mxu0 %v770
      %1007 = vmatprep.subr.bf16.mxu0 0
      %1008 = vmatpush1.bf16.msra.mxu0 0
      %1009 = vmatprep.subr.bf16.mxu0 0
      %1010 = vmatpush1.bf16.msra.mxu0 0
      %1011 = vmatprep.subr.bf16.mxu0 0
      %1012 = vmatpush1.bf16.msra.mxu0 0
      %1013 = vmatprep.subr.bf16.mxu0 0
      %1014 = vmatpush1.bf16.msra.mxu0 0
      %1015 = vmatprep.subr.bf16.mxu0 0
      %1016 = vmatpush1.bf16.msra.mxu0 0
      %1017 = vmatprep.subr.bf16.mxu0 0
      %1018 = vmatpush1.bf16.msra.mxu0 0
      %1019 = vmatprep.subr.bf16.mxu0 0
      %1020 = vmatpush1.bf16.msra.mxu0 0
      %1021 = vmatprep.subr.bf16.mxu0 0
      %1022 = vmatpush1.bf16.msra.mxu0 0
      %1023 = vmatprep.subr.bf16.mxu0 0
      %1024 = vmatpush1.bf16.msra.mxu0 0
      %1025 = vmatprep.subr.bf16.mxu0 0
      %1026 = vmatpush1.bf16.msra.mxu0 0
      %1027 = vmatprep.subr.bf16.mxu0 0
      %1028 = vmatpush1.bf16.msra.mxu0 0
      %1029 = vmatprep.subr.bf16.mxu0 0
      %1030 = vmatpush1.bf16.msra.mxu0 0
      %1031 = vmatprep.mubr.bf16.mxu0 0
      %1032 = vmatmul.mubr.bf16.gmra.mrb[0].mxu0 %v846
      %v1033 = vpop.f32.mrb[0].mxu0
      %v1034 = vadd.f32 %v963, %v1033
      %v1035 = vpop.f32.mrb[0].mxu0
      %v1036 = vadd.f32 %v965, %v1035
      %v1037 = vpop.f32.mrb[0].mxu0
      %v1038 = vadd.f32 %v967, %v1037
      %v1039 = vpop.f32.mrb[0].mxu0
      %v1040 = vadd.f32 %v969, %v1039
      %1041 = vmatprep.mubr.bf16.mxu0 0
      %1042 = vmatmul.mubr.bf16.gmra.mrb[0].mxu0 %v849
      %v1043 = vpop.f32.mrb[0].mxu0
      %v1044 = vadd.f32 %v973, %v1043
      %v1045 = vpop.f32.mrb[0].mxu0
      %v1046 = vadd.f32 %v975, %v1045
      %v1047 = vpop.f32.mrb[0].mxu0
      %v1048 = vadd.f32 %v977, %v1047
      %v1049 = vpop.f32.mrb[0].mxu0
      %v1050 = vadd.f32 %v979, %v1049
      %1051 = vmatprep.mubr.bf16.mxu0 0
      %1052 = vmatmul.mubr.bf16.gmra.mrb[0].mxu0 %v852
      %v1053 = vpop.f32.mrb[0].mxu0
      %v1054 = vadd.f32 %v983, %v1053
      %v1055 = vpop.f32.mrb[0].mxu0
      %v1056 = vadd.f32 %v985, %v1055
      %v1057 = vpop.f32.mrb[0].mxu0
      %v1058 = vadd.f32 %v987, %v1057
      %v1059 = vpop.f32.mrb[0].mxu0
      %v1060 = vadd.f32 %v989, %v1059
      %1061 = vmatprep.mubr.bf16.mxu0 0
      %1062 = vmatmul.mubr.bf16.gmra.mrb[0].mxu0 %v855
      %v1063 = vpop.f32.mrb[0].mxu0
      %v1064 = vadd.f32 %v993, %v1063
      %v1065 = vpop.f32.mrb[0].mxu0
      %v1066 = vadd.f32 %v995, %v1065
      %v1067 = vpop.f32.mrb[0].mxu0
      %v1068 = vpop.f32.mrb[0].mxu0
      %1069 = vdwg.mxu0
      %v1142 = vunpack.c.l.b16 %v319
      %v1143 = vunpack.c.h.b16 %v319
      %v1144 = vunpack.c.l.b16 %v320
      %v1145 = vunpack.c.h.b16 %v320
      %v1146 = vunpack.c.l.b16 %v321
      %v1147 = vunpack.c.h.b16 %v321
      %v1148 = vunpack.c.l.b16 %v322
      %v1149 = vunpack.c.h.b16 %v322
      %v1150 = vunpack.c.l.b16 %v323
      %v1151 = vunpack.c.h.b16 %v323
      %v1152 = vunpack.c.l.b16 %v324
      %v1153 = vunpack.c.h.b16 %v324
      %v1154 = vunpack.c.l.b16 %v325
      %v1155 = vunpack.c.h.b16 %v325
      %v1156 = vunpack.c.l.b16 %v326
      %v1157 = vunpack.c.h.b16 %v326
      %v1158 = vunpack.c.l.b16 %v327
      %v1159 = vunpack.c.h.b16 %v327
      %v1160 = vunpack.c.l.b16 %v328
      %v1161 = vunpack.c.h.b16 %v328
      %v1162 = vunpack.c.l.b16 %v329
      %v1163 = vunpack.c.h.b16 %v329
      %v1164 = vunpack.c.l.b16 %v330
      %v1165 = vunpack.c.h.b16 %v330
      %v1166 = vunpack.c.l.b16 %v331
      %v1167 = vunpack.c.h.b16 %v331
      %v1168 = vunpack.c.l.b16 %v332
      %v1169 = vunpack.c.h.b16 %v332
      %v1170 = vunpack.c.l.b16 %v333
      %v1171 = vunpack.c.h.b16 %v333
      %v1172 = vunpack.c.l.b16 %v334
      %v1173 = vunpack.c.h.b16 %v334
      %v1174 = vunpack.c.l.b16 %v335
      %v1175 = vunpack.c.h.b16 %v335
      %v1176 = vunpack.c.l.b16 %v336
      %v1177 = vunpack.c.h.b16 %v336
      %v1178 = vunpack.c.l.b16 %v337
      %v1179 = vunpack.c.h.b16 %v337
      %v1180 = vunpack.c.l.b16 %v338
      %v1181 = vunpack.c.h.b16 %v338
      %v1182 = vunpack.c.l.b16 %v339
      %v1183 = vunpack.c.h.b16 %v339
      %v1184 = vunpack.c.l.b16 %v340
      %v1185 = vunpack.c.h.b16 %v340
      %v1186 = vunpack.c.l.b16 %v341
      %v1187 = vunpack.c.h.b16 %v341
      %v1188 = vunpack.c.l.b16 %v342
      %v1189 = vunpack.c.h.b16 %v342
      %v1190 = vunpack.c.l.b16 %v343
      %v1191 = vunpack.c.h.b16 %v343
      %v1192 = vunpack.c.l.b16 %v344
      %v1193 = vunpack.c.h.b16 %v344
      %v1194 = vunpack.c.l.b16 %v345
      %v1195 = vunpack.c.h.b16 %v345
      %v1196 = vunpack.c.l.b16 %v346
      %v1197 = vunpack.c.h.b16 %v346
      %v1198 = vunpack.c.l.b16 %v347
      %v1199 = vunpack.c.h.b16 %v347
      %v1200 = vunpack.c.l.b16 %v348
      %v1201 = vunpack.c.h.b16 %v348
      %v1202 = vunpack.c.l.b16 %v349
      %v1203 = vunpack.c.h.b16 %v349
      %v1204 = vunpack.c.l.b16 %v350
      %v1205 = vunpack.c.h.b16 %v350
      %v1206 = vunpack.c.l.b16 %v351
      %v1207 = vunpack.c.h.b16 %v351
      %v1208 = vunpack.c.l.b16 %v352
      %v1209 = vunpack.c.h.b16 %v352
      %v1210 = vunpack.c.l.b16 %v353
      %v1211 = vunpack.c.h.b16 %v353
      %v1212 = vunpack.c.l.b16 %v354
      %v1213 = vunpack.c.h.b16 %v354
      %v1214 = vunpack.c.l.b16 %v355
      %v1215 = vunpack.c.h.b16 %v355
      %v1216 = vunpack.c.l.b16 %v356
      %v1217 = vunpack.c.h.b16 %v356
      %v1218 = vunpack.c.l.b16 %v357
      %v1219 = vunpack.c.h.b16 %v357
      %v1220 = vunpack.c.l.b16 %v358
      %v1221 = vunpack.c.h.b16 %v358
      %v1222 = vunpack.c.l.b16 %v359
      %v1223 = vunpack.c.h.b16 %v359
      %v1224 = vunpack.c.l.b16 %v360
      %v1225 = vunpack.c.h.b16 %v360
      %v1226 = vunpack.c.l.b16 %v361
      %v1227 = vunpack.c.h.b16 %v361
      %v1228 = vunpack.c.l.b16 %v362
      %v1229 = vunpack.c.h.b16 %v362
      %v1230 = vunpack.c.l.b16 %v363
      %v1231 = vunpack.c.h.b16 %v363
      %v1232 = vunpack.c.l.b16 %v364
      %v1233 = vunpack.c.h.b16 %v364
      %v1234 = vunpack.c.l.b16 %v365
      %v1235 = vunpack.c.h.b16 %v365
      %v1236 = vunpack.c.l.b16 %v366
      %v1237 = vunpack.c.h.b16 %v366
      %v1238 = vunpack.c.l.b16 %v367
      %v1239 = vunpack.c.h.b16 %v367
      %v1240 = vunpack.c.l.b16 %v368
      %v1241 = vunpack.c.h.b16 %v368
      %v1242 = vunpack.c.l.b16 %v369
      %v1243 = vunpack.c.h.b16 %v369
      %v1244 = vunpack.c.l.b16 %v370
      %v1245 = vunpack.c.h.b16 %v370
      %v1246 = vunpack.c.l.b16 %v371
      %v1247 = vunpack.c.h.b16 %v371
      %v1248 = vunpack.c.l.b16 %v372
      %v1249 = vunpack.c.h.b16 %v372
      %v1250 = vunpack.c.l.b16 %v373
      %v1251 = vunpack.c.h.b16 %v373
      %v1252 = vunpack.c.l.b16 %v374
      %v1253 = vunpack.c.h.b16 %v374
      %v1254 = vunpack.c.l.b16 %v375
      %v1255 = vunpack.c.h.b16 %v375
      %v1256 = vunpack.c.l.b16 %v376
      %v1257 = vunpack.c.h.b16 %v376
      %v1258 = vunpack.c.l.b16 %v377
      %v1259 = vunpack.c.h.b16 %v377
      %v1260 = vunpack.c.l.b16 %v378
      %v1261 = vunpack.c.h.b16 %v378
      %v1262 = vunpack.c.l.b16 %v379
      %v1263 = vunpack.c.h.b16 %v379
      %v1264 = vunpack.c.l.b16 %v380
      %v1265 = vunpack.c.h.b16 %v380
      %v1266 = vunpack.c.l.b16 %v381
      %v1267 = vunpack.c.h.b16 %v381
      %v1268 = vunpack.c.l.b16 %v382
      %v1269 = vunpack.c.h.b16 %v382
      %v1270 = vunpack.c.l.b16 %v383
      %v1271 = vunpack.c.h.b16 %v383
      %v1272 = vunpack.c.l.b16 %v384
      %v1273 = vunpack.c.h.b16 %v384
      %v1274 = vunpack.c.l.b16 %v385
      %v1275 = vunpack.c.h.b16 %v385
      %v1276 = vunpack.c.l.b16 %v386
      %v1277 = vunpack.c.h.b16 %v386
      %v1278 = vunpack.c.l.b16 %v387
      %v1279 = vunpack.c.h.b16 %v387
      %v1280 = vunpack.c.l.b16 %v388
      %v1281 = vunpack.c.h.b16 %v388
      %v1282 = vunpack.c.l.b16 %v389
      %v1283 = vunpack.c.h.b16 %v389
      %v1284 = vunpack.c.l.b16 %v390
      %v1285 = vunpack.c.h.b16 %v390
      %v1286 = vpack.c.b16 %v1144, %v1142
      %v1287 = vpack.c.b16 %v1145, %v1143
      %v1288 = vpack.c.b16 %v1148, %v1146
      %v1289 = vpack.c.b16 %v1149, %v1147
      %v1290 = vpack.c.b16 %v1152, %v1150
      %v1291 = vpack.c.b16 %v1153, %v1151
      %v1292 = vpack.c.b16 %v1156, %v1154
      %v1293 = vpack.c.b16 %v1157, %v1155
      %v1294 = vpack.c.b16 %v1160, %v1158
      %v1295 = vpack.c.b16 %v1161, %v1159
      %v1296 = vpack.c.b16 %v1164, %v1162
      %v1297 = vpack.c.b16 %v1165, %v1163
      %v1298 = vpack.c.b16 %v1168, %v1166
      %v1299 = vpack.c.b16 %v1169, %v1167
      %v1300 = vpack.c.b16 %v1172, %v1170
      %v1301 = vpack.c.b16 %v1173, %v1171
      %v1302 = vpack.c.b16 %v1176, %v1174
      %v1303 = vpack.c.b16 %v1177, %v1175
      %v1304 = vpack.c.b16 %v1180, %v1178
      %v1305 = vpack.c.b16 %v1181, %v1179
      %v1306 = vpack.c.b16 %v1184, %v1182
      %v1307 = vpack.c.b16 %v1185, %v1183
      %v1308 = vpack.c.b16 %v1188, %v1186
      %v1309 = vpack.c.b16 %v1189, %v1187
      %v1310 = vpack.c.b16 %v1192, %v1190
      %v1311 = vpack.c.b16 %v1193, %v1191
      %v1312 = vpack.c.b16 %v1196, %v1194
      %v1313 = vpack.c.b16 %v1197, %v1195
      %v1314 = vpack.c.b16 %v1200, %v1198
      %v1315 = vpack.c.b16 %v1201, %v1199
      %v1316 = vpack.c.b16 %v1204, %v1202
      %v1317 = vpack.c.b16 %v1205, %v1203
      %v1318 = vpack.c.b16 %v1208, %v1206
      %v1319 = vpack.c.b16 %v1209, %v1207
      %v1320 = vpack.c.b16 %v1212, %v1210
      %v1321 = vpack.c.b16 %v1213, %v1211
      %v1322 = vpack.c.b16 %v1216, %v1214
      %v1323 = vpack.c.b16 %v1217, %v1215
      %v1324 = vpack.c.b16 %v1220, %v1218
      %v1325 = vpack.c.b16 %v1221, %v1219
      %v1326 = vpack.c.b16 %v1224, %v1222
      %v1327 = vpack.c.b16 %v1225, %v1223
      %v1328 = vpack.c.b16 %v1228, %v1226
      %v1329 = vpack.c.b16 %v1229, %v1227
      %v1330 = vpack.c.b16 %v1232, %v1230
      %v1331 = vpack.c.b16 %v1233, %v1231
      %v1332 = vpack.c.b16 %v1236, %v1234
      %v1333 = vpack.c.b16 %v1237, %v1235
      %v1334 = vpack.c.b16 %v1240, %v1238
      %v1335 = vpack.c.b16 %v1241, %v1239
      %v1336 = vpack.c.b16 %v1244, %v1242
      %v1337 = vpack.c.b16 %v1245, %v1243
      %v1338 = vpack.c.b16 %v1248, %v1246
      %v1339 = vpack.c.b16 %v1249, %v1247
      %v1340 = vpack.c.b16 %v1252, %v1250
      %v1341 = vpack.c.b16 %v1253, %v1251
      %v1342 = vpack.c.b16 %v1256, %v1254
      %v1343 = vpack.c.b16 %v1257, %v1255
      %v1344 = vpack.c.b16 %v1260, %v1258
      %v1345 = vpack.c.b16 %v1261, %v1259
      %v1346 = vpack.c.b16 %v1264, %v1262
      %v1347 = vpack.c.b16 %v1265, %v1263
      %v1348 = vpack.c.b16 %v1268, %v1266
      %v1349 = vpack.c.b16 %v1269, %v1267
      %v1350 = vpack.c.b16 %v1272, %v1270
      %v1351 = vpack.c.b16 %v1273, %v1271
      %v1352 = vpack.c.b16 %v1276, %v1274
      %v1353 = vpack.c.b16 %v1277, %v1275
      %v1354 = vpack.c.b16 %v1280, %v1278
      %v1355 = vpack.c.b16 %v1281, %v1279
      %v1356 = vpack.c.b16 %v1284, %v1282
      %v1357 = vpack.c.b16 %v1285, %v1283
      %v1431 = vsel %vm844, %v303, 0
      %v1434 = vsel %vm844, %v308, 0
      %v1437 = vsel %vm844, %v313, 0
      %v1440 = vsel %vm844, %v318, 0
      %1442 = vmatprep.subr.bf16.mxu0 %v1287
      %1443 = vmatpush1.bf16.msra.mxu0 %v1286
      %1444 = vmatprep.subr.bf16.mxu0 %v1289
      %1445 = vmatpush1.bf16.msra.mxu0 %v1288
      %1446 = vmatprep.subr.bf16.mxu0 %v1291
      %1447 = vmatpush1.bf16.msra.mxu0 %v1290
      %1448 = vmatprep.subr.bf16.mxu0 %v1293
      %1449 = vmatpush1.bf16.msra.mxu0 %v1292
      %1450 = vmatprep.subr.bf16.mxu0 %v1295
      %1451 = vmatpush1.bf16.msra.mxu0 %v1294
      %1452 = vmatprep.subr.bf16.mxu0 %v1297
      %1453 = vmatpush1.bf16.msra.mxu0 %v1296
      %1454 = vmatprep.subr.bf16.mxu0 %v1299
      %1455 = vmatpush1.bf16.msra.mxu0 %v1298
      %1456 = vmatprep.subr.bf16.mxu0 %v1301
      %1457 = vmatpush1.bf16.msra.mxu0 %v1300
      %1458 = vmatprep.subr.bf16.mxu0 %v1303
      %1459 = vmatpush1.bf16.msra.mxu0 %v1302
      %1460 = vmatprep.subr.bf16.mxu0 %v1305
      %1461 = vmatpush1.bf16.msra.mxu0 %v1304
      %1462 = vmatprep.subr.bf16.mxu0 %v1307
      %1463 = vmatpush1.bf16.msra.mxu0 %v1306
      %1464 = vmatprep.subr.bf16.mxu0 %v1309
      %1465 = vmatpush1.bf16.msra.mxu0 %v1308
      %1466 = vmatprep.subr.bf16.mxu0 %v1311
      %1467 = vmatpush1.bf16.msra.mxu0 %v1310
      %1468 = vmatprep.subr.bf16.mxu0 %v1313
      %1469 = vmatpush1.bf16.msra.mxu0 %v1312
      %1470 = vmatprep.subr.bf16.mxu0 %v1315
      %1471 = vmatpush1.bf16.msra.mxu0 %v1314
      %1472 = vmatprep.subr.bf16.mxu0 %v1317
      %1473 = vmatpush1.bf16.msra.mxu0 %v1316
      %1474 = vmatprep.mubr.bf16.mxu0 %v300
      %1475 = vmatmul.mubr.bf16.gmra.mrb[0].mxu0 %v299
      %v1476 = vpop.f32.mrb[0].mxu0
      %v1477 = vadd.f32 %v1034, %v1476
      %v1478 = vpop.f32.mrb[0].mxu0
      %v1479 = vadd.f32 %v1036, %v1478
      %v1480 = vpop.f32.mrb[0].mxu0
      %v1481 = vadd.f32 %v1038, %v1480
      %v1482 = vpop.f32.mrb[0].mxu0
      %v1483 = vadd.f32 %v1040, %v1482
      %1484 = vmatprep.mubr.bf16.mxu0 %v305
      %1485 = vmatmul.mubr.bf16.gmra.mrb[0].mxu0 %v304
      %v1486 = vpop.f32.mrb[0].mxu0
      %v1487 = vadd.f32 %v1044, %v1486
      %v1488 = vpop.f32.mrb[0].mxu0
      %v1489 = vadd.f32 %v1046, %v1488
      %v1490 = vpop.f32.mrb[0].mxu0
      %v1491 = vadd.f32 %v1048, %v1490
      %v1492 = vpop.f32.mrb[0].mxu0
      %v1493 = vadd.f32 %v1050, %v1492
      %1494 = vmatprep.mubr.bf16.mxu0 %v310
      %1495 = vmatmul.mubr.bf16.gmra.mrb[0].mxu0 %v309
      %v1496 = vpop.f32.mrb[0].mxu0
      %v1497 = vadd.f32 %v1054, %v1496
      %v1498 = vpop.f32.mrb[0].mxu0
      %v1499 = vadd.f32 %v1056, %v1498
      %v1500 = vpop.f32.mrb[0].mxu0
      %v1501 = vadd.f32 %v1058, %v1500
      %v1502 = vpop.f32.mrb[0].mxu0
      %v1503 = vadd.f32 %v1060, %v1502
      %1504 = vmatprep.mubr.bf16.mxu0 %v315
      %1505 = vmatmul.mubr.bf16.gmra.mrb[0].mxu0 %v314
      %v1506 = vpop.f32.mrb[0].mxu0
      %v1507 = vadd.f32 %v1064, %v1506
      %v1508 = vpop.f32.mrb[0].mxu0
      %v1509 = vadd.f32 %v1066, %v1508
      %v1510 = vpop.f32.mrb[0].mxu0
      %v1511 = vpop.f32.mrb[0].mxu0
      %1512 = vdwg.mxu0
      %1513 = vmatprep.subr.bf16.mxu0 %v1319
      %1514 = vmatpush1.bf16.msra.mxu0 %v1318
      %1515 = vmatprep.subr.bf16.mxu0 %v1321
      %1516 = vmatpush1.bf16.msra.mxu0 %v1320
      %1517 = vmatprep.subr.bf16.mxu0 %v1323
      %1518 = vmatpush1.bf16.msra.mxu0 %v1322
      %1519 = vmatprep.subr.bf16.mxu0 %v1325
      %1520 = vmatpush1.bf16.msra.mxu0 %v1324
      %1521 = vmatprep.subr.bf16.mxu0 %v1327
      %1522 = vmatpush1.bf16.msra.mxu0 %v1326
      %1523 = vmatprep.subr.bf16.mxu0 %v1329
      %1524 = vmatpush1.bf16.msra.mxu0 %v1328
      %1525 = vmatprep.subr.bf16.mxu0 %v1331
      %1526 = vmatpush1.bf16.msra.mxu0 %v1330
      %1527 = vmatprep.subr.bf16.mxu0 %v1333
      %1528 = vmatpush1.bf16.msra.mxu0 %v1332
      %1529 = vmatprep.subr.bf16.mxu0 %v1335
      %1530 = vmatpush1.bf16.msra.mxu0 %v1334
      %1531 = vmatprep.subr.bf16.mxu0 %v1337
      %1532 = vmatpush1.bf16.msra.mxu0 %v1336
      %1533 = vmatprep.subr.bf16.mxu0 %v1339
      %1534 = vmatpush1.bf16.msra.mxu0 %v1338
      %1535 = vmatprep.subr.bf16.mxu0 %v1341
      %1536 = vmatpush1.bf16.msra.mxu0 %v1340
      %1537 = vmatprep.subr.bf16.mxu0 %v1343
      %1538 = vmatpush1.bf16.msra.mxu0 %v1342
      %1539 = vmatprep.subr.bf16.mxu0 %v1345
      %1540 = vmatpush1.bf16.msra.mxu0 %v1344
      %1541 = vmatprep.subr.bf16.mxu0 %v1347
      %1542 = vmatpush1.bf16.msra.mxu0 %v1346
      %1543 = vmatprep.subr.bf16.mxu0 %v1349
      %1544 = vmatpush1.bf16.msra.mxu0 %v1348
      %1545 = vmatprep.mubr.bf16.mxu0 %v302
      %1546 = vmatmul.mubr.bf16.gmra.mrb[0].mxu0 %v301
      %v1547 = vpop.f32.mrb[0].mxu0
      %v1548 = vadd.f32 %v1477, %v1547
      %v1549 = vpop.f32.mrb[0].mxu0
      %v1550 = vadd.f32 %v1479, %v1549
      %v1551 = vpop.f32.mrb[0].mxu0
      %v1552 = vadd.f32 %v1481, %v1551
      %v1553 = vpop.f32.mrb[0].mxu0
      %v1554 = vadd.f32 %v1483, %v1553
      %1555 = vmatprep.mubr.bf16.mxu0 %v307
      %1556 = vmatmul.mubr.bf16.gmra.mrb[0].mxu0 %v306
      %v1557 = vpop.f32.mrb[0].mxu0
      %v1558 = vadd.f32 %v1487, %v1557
      %v1559 = vpop.f32.mrb[0].mxu0
      %v1560 = vadd.f32 %v1489, %v1559
      %v1561 = vpop.f32.mrb[0].mxu0
      %v1562 = vadd.f32 %v1491, %v1561
      %v1563 = vpop.f32.mrb[0].mxu0
      %v1564 = vadd.f32 %v1493, %v1563
      %1565 = vmatprep.mubr.bf16.mxu0 %v312
      %1566 = vmatmul.mubr.bf16.gmra.mrb[0].mxu0 %v311
      %v1567 = vpop.f32.mrb[0].mxu0
      %v1568 = vadd.f32 %v1497, %v1567
      %v1569 = vpop.f32.mrb[0].mxu0
      %v1570 = vadd.f32 %v1499, %v1569
      %v1571 = vpop.f32.mrb[0].mxu0
      %v1572 = vadd.f32 %v1501, %v1571
      %v1573 = vpop.f32.mrb[0].mxu0
      %v1574 = vadd.f32 %v1503, %v1573
      %1575 = vmatprep.mubr.bf16.mxu0 %v317
      %1576 = vmatmul.mubr.bf16.gmra.mrb[0].mxu0 %v316
      %v1577 = vpop.f32.mrb[0].mxu0
      %v1578 = vadd.f32 %v1507, %v1577
      %v1579 = vpop.f32.mrb[0].mxu0
      %v1580 = vadd.f32 %v1509, %v1579
      %v1581 = vpop.f32.mrb[0].mxu0
      %v1582 = vpop.f32.mrb[0].mxu0
      %1583 = vdwg.mxu0
      %1584 = vmatprep.subr.bf16.mxu0 %v1351
      %1585 = vmatpush1.bf16.msra.mxu0 %v1350
      %1586 = vmatprep.subr.bf16.mxu0 %v1353
      %1587 = vmatpush1.bf16.msra.mxu0 %v1352
      %1588 = vmatprep.subr.bf16.mxu0 %v1355
      %1589 = vmatpush1.bf16.msra.mxu0 %v1354
      %1590 = vmatprep.subr.bf16.mxu0 %v1357
      %1591 = vmatpush1.bf16.msra.mxu0 %v1356
      %1592 = vmatprep.subr.bf16.mxu0 0
      %1593 = vmatpush1.bf16.msra.mxu0 0
      %1594 = vmatprep.subr.bf16.mxu0 0
      %1595 = vmatpush1.bf16.msra.mxu0 0
      %1596 = vmatprep.subr.bf16.mxu0 0
      %1597 = vmatpush1.bf16.msra.mxu0 0
      %1598 = vmatprep.subr.bf16.mxu0 0
      %1599 = vmatpush1.bf16.msra.mxu0 0
      %1600 = vmatprep.subr.bf16.mxu0 0
      %1601 = vmatpush1.bf16.msra.mxu0 0
      %1602 = vmatprep.subr.bf16.mxu0 0
      %1603 = vmatpush1.bf16.msra.mxu0 0
      %1604 = vmatprep.subr.bf16.mxu0 0
      %1605 = vmatpush1.bf16.msra.mxu0 0
      %1606 = vmatprep.subr.bf16.mxu0 0
      %1607 = vmatpush1.bf16.msra.mxu0 0
      %1608 = vmatprep.subr.bf16.mxu0 0
      %1609 = vmatpush1.bf16.msra.mxu0 0
      %1610 = vmatprep.subr.bf16.mxu0 0
      %1611 = vmatpush1.bf16.msra.mxu0 0
      %1612 = vmatprep.subr.bf16.mxu0 0
      %1613 = vmatpush1.bf16.msra.mxu0 0
      %1614 = vmatprep.subr.bf16.mxu0 0
      %1615 = vmatpush1.bf16.msra.mxu0 0
      %1616 = vmatprep.mubr.bf16.mxu0 0
      %1617 = vmatmul.mubr.bf16.gmra.mrb[0].mxu0 %v1431
      %v1618 = vpop.f32.mrb[0].mxu0
      %v1619 = vadd.f32 %v1548, %v1618
      %v1620 = vpop.f32.mrb[0].mxu0
      %v1621 = vadd.f32 %v1550, %v1620
      %v1622 = vpop.f32.mrb[0].mxu0
      %v1623 = vadd.f32 %v1552, %v1622
      %v1624 = vpop.f32.mrb[0].mxu0
      %v1625 = vadd.f32 %v1554, %v1624
      %1626 = vmatprep.mubr.bf16.mxu0 0
      %1627 = vmatmul.mubr.bf16.gmra.mrb[0].mxu0 %v1434
      %v1628 = vpop.f32.mrb[0].mxu0
      %v1629 = vadd.f32 %v1558, %v1628
      %v1630 = vpop.f32.mrb[0].mxu0
      %v1631 = vadd.f32 %v1560, %v1630
      %v1632 = vpop.f32.mrb[0].mxu0
      %v1633 = vadd.f32 %v1562, %v1632
      %v1634 = vpop.f32.mrb[0].mxu0
      %v1635 = vadd.f32 %v1564, %v1634
      %1636 = vmatprep.mubr.bf16.mxu0 0
      %1637 = vmatmul.mubr.bf16.gmra.mrb[0].mxu0 %v1437
      %v1638 = vpop.f32.mrb[0].mxu0
      %v1639 = vadd.f32 %v1568, %v1638
      %v1640 = vpop.f32.mrb[0].mxu0
      %v1641 = vadd.f32 %v1570, %v1640
      %v1642 = vpop.f32.mrb[0].mxu0
      %v1643 = vadd.f32 %v1572, %v1642
      %v1644 = vpop.f32.mrb[0].mxu0
      %v1645 = vadd.f32 %v1574, %v1644
      %1646 = vmatprep.mubr.bf16.mxu0 0
      %1647 = vmatmul.mubr.bf16.gmra.mrb[0].mxu0 %v1440
      %v1648 = vpop.f32.mrb[0].mxu0
      %v1649 = vadd.f32 %v1578, %v1648
      %v1650 = vpop.f32.mrb[0].mxu0
      %v1651 = vadd.f32 %v1580, %v1650
      %v1652 = vpop.f32.mrb[0].mxu0
      %v1653 = vpop.f32.mrb[0].mxu0
      %1654 = vdwg.mxu0
      %v1655 = vpack.c.bf16 %v224, %v289
      %v1656 = vpack.c.bf16 %v225, %v290
      %v1657 = vpack.c.bf16 %v226, %v291
      %v1658 = vpack.c.bf16 %v227, %v292
      %v1659 = vpack.c.bf16 %v228, %v293
      %v1660 = vpack.c.bf16 %v294, %v294
      %v1661 = vpack.c.bf16 %v295, %v295
      %v1662 = vpack.c.bf16 %v296, %v296
      %v1663 = vpack.c.bf16 %v297, %v297
      %v1664 = vpack.c.bf16 %v298, %v298
      %s1665 = scalar_lea.vmem %s2, 1152
      %v1666 = vld [vmem:[%s1665] sm:$0xff]
      %v1667 = vld [vmem:[%s1665 + $0x8] sm:$0xff]
      %v1668 = vld [vmem:[%s1665 + $0x10] sm:$0xff]
      %v1669 = vld [vmem:[%s1665 + $0x18] sm:$0xff]
      %v1670 = vld [vmem:[%s1665 + $0x20] sm:$0xff]
      %v1671 = vld [vmem:[%s1665 + $0x28] sm:$0xff]
      %v1672 = vld [vmem:[%s1665 + $0x30] sm:$0xff]
      %v1673 = vld [vmem:[%s1665 + $0x38] sm:$0xff]
      %v1674 = vld [vmem:[%s1665 + $0x40] sm:$0xff]
      %v1675 = vld [vmem:[%s1665 + $0x48] sm:$0xff]
      %v1676 = vld [vmem:[%s1665 + $0x50] sm:$0xff]
      %v1677 = vld [vmem:[%s1665 + $0x58] sm:$0xff]
      %v1678 = vld [vmem:[%s1665 + $0x60] sm:$0xff]
      %v1679 = vld [vmem:[%s1665 + $0x68] sm:$0xff]
      %v1680 = vld [vmem:[%s1665 + $0x70] sm:$0xff]
      %v1681 = vld [vmem:[%s1665 + $0x78] sm:$0xff]
      %v1682 = vld [vmem:[%s1665 + $0x80] sm:$0xff]
      %v1683 = vld [vmem:[%s1665 + $0x88] sm:$0xff]
      %v1684 = vld [vmem:[%s1665 + $0x90] sm:$0xff]
      %v1685 = vld [vmem:[%s1665 + $0x98] sm:$0xff]
      %v1686 = vld [vmem:[%s1665 + $0xa0] sm:$0xff]
      %v1687 = vld [vmem:[%s1665 + $0xa8] sm:$0xff]
      %v1688 = vld [vmem:[%s1665 + $0xb0] sm:$0xff]
      %v1689 = vld [vmem:[%s1665 + $0xb8] sm:$0xff]
      %v1690 = vld [vmem:[%s1665 + $0xc0] sm:$0xff]
      %v1691 = vld [vmem:[%s1665 + $0xc8] sm:$0xff]
      %v1692 = vld [vmem:[%s1665 + $0xd0] sm:$0xff]
      %v1693 = vld [vmem:[%s1665 + $0xd8] sm:$0xff]
      %v1694 = vld [vmem:[%s1665 + $0xe0] sm:$0xff]
      %v1695 = vld [vmem:[%s1665 + $0xe8] sm:$0xff]
      %v1696 = vld [vmem:[%s1665 + $0xf0] sm:$0xff]
      %v1697 = vld [vmem:[%s1665 + $0xf8] sm:$0xff]
      %v1698 = vld [vmem:[%s1665 + $0x100] sm:$0xff]
      %v1699 = vld [vmem:[%s1665 + $0x108] sm:$0xff]
      %v1700 = vld [vmem:[%s1665 + $0x110] sm:$0xff]
      %v1701 = vld [vmem:[%s1665 + $0x118] sm:$0xff]
      %v1702 = vld [vmem:[%s1665 + $0x120] sm:$0xff]
      %v1703 = vld [vmem:[%s1665 + $0x128] sm:$0xff]
      %v1704 = vld [vmem:[%s1665 + $0x130] sm:$0xff]
      %v1705 = vld [vmem:[%s1665 + $0x138] sm:$0xff]
      %v1706 = vld [vmem:[%s1665 + $0x140] sm:$0xff]
      %v1707 = vld [vmem:[%s1665 + $0x148] sm:$0xff]
      %v1708 = vld [vmem:[%s1665 + $0x150] sm:$0xff]
      %v1709 = vld [vmem:[%s1665 + $0x158] sm:$0xff]
      %v1710 = vld [vmem:[%s1665 + $0x160] sm:$0xff]
      %v1711 = vld [vmem:[%s1665 + $0x168] sm:$0xff]
      %v1712 = vld [vmem:[%s1665 + $0x170] sm:$0xff]
      %v1713 = vld [vmem:[%s1665 + $0x178] sm:$0xff]
      %v1714 = vld [vmem:[%s1665 + $0x180] sm:$0xff]
      %v1715 = vld [vmem:[%s1665 + $0x188] sm:$0xff]
      %v1716 = vld [vmem:[%s1665 + $0x190] sm:$0xff]
      %v1717 = vld [vmem:[%s1665 + $0x198] sm:$0xff]
      %v1718 = vld [vmem:[%s1665 + $0x1a0] sm:$0xff]
      %v1719 = vld [vmem:[%s1665 + $0x1a8] sm:$0xff]
      %v1720 = vld [vmem:[%s1665 + $0x1b0] sm:$0xff]
      %v1721 = vld [vmem:[%s1665 + $0x1b8] sm:$0xff]
      %v1722 = vld [vmem:[%s1665 + $0x1c0] sm:$0xff]
      %v1723 = vld [vmem:[%s1665 + $0x1c8] sm:$0xff]
      %v1724 = vld [vmem:[%s1665 + $0x1d0] sm:$0xff]
      %v1725 = vld [vmem:[%s1665 + $0x1d8] sm:$0xff]
      %v1726 = vld [vmem:[%s1665 + $0x1e0] sm:$0xff]
      %v1727 = vld [vmem:[%s1665 + $0x1e8] sm:$0xff]
      %v1728 = vld [vmem:[%s1665 + $0x1f0] sm:$0xff]
      %v1729 = vld [vmem:[%s1665 + $0x1f8] sm:$0xff]
      %v1730 = vld [vmem:[%s1665 + $0x200] sm:$0xff]
      %v1731 = vld [vmem:[%s1665 + $0x208] sm:$0xff]
      %v1732 = vld [vmem:[%s1665 + $0x210] sm:$0xff]
      %v1733 = vld [vmem:[%s1665 + $0x218] sm:$0xff]
      %v1734 = vld [vmem:[%s1665 + $0x220] sm:$0xff]
      %v1735 = vld [vmem:[%s1665 + $0x228] sm:$0xff]
      %v1736 = vld [vmem:[%s1665 + $0x230] sm:$0xff]
      %v1737 = vld [vmem:[%s1665 + $0x238] sm:$0xff]
      %vm1738 = vsmask.f32 4352
      %v1740 = vshrl.u32 %v1655, 16
      %v1742 = vrot.slane %v1740, 3
      %v1743 = vshll.u32 %v1655, 16
      %v1745 = vrot.slane %v1743, 4
      %v1746 = vor.u32 %v1742, %v1745
      %v1748 = vshrl.u32 %v304, 16
      %v1750 = vrot.slane %v1748, 3
      %v1751 = vshll.u32 %v304, 16
      %v1753 = vrot.slane %v1751, 4
      %v1754 = vor.u32 %v1750, %v1753
      %v1755 = vsel %vm1738, %v1746, %v1754
      %v1757 = vshrl.u32 %v1656, 16
      %v1759 = vrot.slane %v1757, 3
      %v1760 = vshll.u32 %v1656, 16
      %v1762 = vrot.slane %v1760, 4
      %v1763 = vor.u32 %v1759, %v1762
      %v1765 = vshrl.u32 %v305, 16
      %v1767 = vrot.slane %v1765, 3
      %v1768 = vshll.u32 %v305, 16
      %v1770 = vrot.slane %v1768, 4
      %v1771 = vor.u32 %v1767, %v1770
      %v1772 = vsel %vm1738, %v1763, %v1771
      %v1774 = vshrl.u32 %v1657, 16
      %v1776 = vrot.slane %v1774, 3
      %v1777 = vshll.u32 %v1657, 16
      %v1779 = vrot.slane %v1777, 4
      %v1780 = vor.u32 %v1776, %v1779
      %v1782 = vshrl.u32 %v306, 16
      %v1784 = vrot.slane %v1782, 3
      %v1785 = vshll.u32 %v306, 16
      %v1787 = vrot.slane %v1785, 4
      %v1788 = vor.u32 %v1784, %v1787
      %v1789 = vsel %vm1738, %v1780, %v1788
      %v1791 = vshrl.u32 %v1658, 16
      %v1793 = vrot.slane %v1791, 3
      %v1794 = vshll.u32 %v1658, 16
      %v1796 = vrot.slane %v1794, 4
      %v1797 = vor.u32 %v1793, %v1796
      %v1799 = vshrl.u32 %v307, 16
      %v1801 = vrot.slane %v1799, 3
      %v1802 = vshll.u32 %v307, 16
      %v1804 = vrot.slane %v1802, 4
      %v1805 = vor.u32 %v1801, %v1804
      %v1806 = vsel %vm1738, %v1797, %v1805
      %v1808 = vshrl.u32 %v1659, 16
      %v1810 = vrot.slane %v1808, 3
      %v1811 = vshll.u32 %v1659, 16
      %v1813 = vrot.slane %v1811, 4
      %v1814 = vor.u32 %v1810, %v1813
      %v1815 = vshrl.u32 %v308, 16
      %v1817 = vrot.slane %v1815, 3
      %v1818 = vshll.u32 %v308, 16
      %v1820 = vrot.slane %v1818, 4
      %v1821 = vor.u32 %v1817, %v1820
      %v1822 = vsel %vm1738, %v1814, %v1821
      %v1824 = vshrl.u32 %v309, 16
      %v1826 = vrot.slane %v1824, 3
      %v1827 = vshll.u32 %v309, 16
      %v1829 = vrot.slane %v1827, 4
      %v1830 = vor.u32 %v1826, %v1829
      %v1831 = vsel %vm1738, %v1754, %v1830
      %v1833 = vshrl.u32 %v310, 16
      %v1835 = vrot.slane %v1833, 3
      %v1836 = vshll.u32 %v310, 16
      %v1838 = vrot.slane %v1836, 4
      %v1839 = vor.u32 %v1835, %v1838
      %v1840 = vsel %vm1738, %v1771, %v1839
      %v1842 = vshrl.u32 %v311, 16
      %v1844 = vrot.slane %v1842, 3
      %v1845 = vshll.u32 %v311, 16
      %v1847 = vrot.slane %v1845, 4
      %v1848 = vor.u32 %v1844, %v1847
      %v1849 = vsel %vm1738, %v1788, %v1848
      %v1851 = vshrl.u32 %v312, 16
      %v1853 = vrot.slane %v1851, 3
      %v1854 = vshll.u32 %v312, 16
      %v1856 = vrot.slane %v1854, 4
      %v1857 = vor.u32 %v1853, %v1856
      %v1858 = vsel %vm1738, %v1805, %v1857
      %v1859 = vshrl.u32 %v313, 16
      %v1861 = vrot.slane %v1859, 3
      %v1862 = vshll.u32 %v313, 16
      %v1864 = vrot.slane %v1862, 4
      %v1865 = vor.u32 %v1861, %v1864
      %v1866 = vsel %vm1738, %v1821, %v1865
      %v1868 = vshrl.u32 %v1660, 16
      %v1870 = vrot.slane %v1868, 3
      %v1871 = vshll.u32 %v1660, 16
      %v1873 = vrot.slane %v1871, 4
      %v1874 = vor.u32 %v1870, %v1873
      %v1875 = vsel %vm1738, %v1830, %v1874
      %v1877 = vshrl.u32 %v1661, 16
      %v1879 = vrot.slane %v1877, 3
      %v1880 = vshll.u32 %v1661, 16
      %v1882 = vrot.slane %v1880, 4
      %v1883 = vor.u32 %v1879, %v1882
      %v1884 = vsel %vm1738, %v1839, %v1883
      %v1886 = vshrl.u32 %v1662, 16
      %v1888 = vrot.slane %v1886, 3
      %v1889 = vshll.u32 %v1662, 16
      %v1891 = vrot.slane %v1889, 4
      %v1892 = vor.u32 %v1888, %v1891
      %v1893 = vsel %vm1738, %v1848, %v1892
      %v1895 = vshrl.u32 %v1663, 16
      %v1897 = vrot.slane %v1895, 3
      %v1898 = vshll.u32 %v1663, 16
      %v1900 = vrot.slane %v1898, 4
      %v1901 = vor.u32 %v1897, %v1900
      %v1902 = vsel %vm1738, %v1857, %v1901
      %v1904 = vshrl.u32 %v1664, 16
      %v1906 = vrot.slane %v1904, 3
      %v1907 = vshll.u32 %v1664, 16
      %v1909 = vrot.slane %v1907, 4
      %v1910 = vor.u32 %v1906, %v1909
      %v1911 = vsel %vm1738, %v1865, %v1910
      %v2000 = vunpack.c.l.b16 %v1666
      %v2001 = vunpack.c.h.b16 %v1666
      %v2002 = vunpack.c.l.b16 %v1667
      %v2003 = vunpack.c.h.b16 %v1667
      %v2004 = vunpack.c.l.b16 %v1668
      %v2005 = vunpack.c.h.b16 %v1668
      %v2006 = vunpack.c.l.b16 %v1669
      %v2007 = vunpack.c.h.b16 %v1669
      %v2008 = vunpack.c.l.b16 %v1670
      %v2009 = vunpack.c.h.b16 %v1670
      %v2010 = vunpack.c.l.b16 %v1671
      %v2011 = vunpack.c.h.b16 %v1671
      %v2012 = vunpack.c.l.b16 %v1672
      %v2013 = vunpack.c.h.b16 %v1672
      %v2014 = vunpack.c.l.b16 %v1673
      %v2015 = vunpack.c.h.b16 %v1673
      %v2016 = vunpack.c.l.b16 %v1674
      %v2017 = vunpack.c.h.b16 %v1674
      %v2018 = vunpack.c.l.b16 %v1675
      %v2019 = vunpack.c.h.b16 %v1675
      %v2020 = vunpack.c.l.b16 %v1676
      %v2021 = vunpack.c.h.b16 %v1676
      %v2022 = vunpack.c.l.b16 %v1677
      %v2023 = vunpack.c.h.b16 %v1677
      %v2024 = vunpack.c.l.b16 %v1678
      %v2025 = vunpack.c.h.b16 %v1678
      %v2026 = vunpack.c.l.b16 %v1679
      %v2027 = vunpack.c.h.b16 %v1679
      %v2028 = vunpack.c.l.b16 %v1680
      %v2029 = vunpack.c.h.b16 %v1680
      %v2030 = vunpack.c.l.b16 %v1681
      %v2031 = vunpack.c.h.b16 %v1681
      %v2032 = vunpack.c.l.b16 %v1682
      %v2033 = vunpack.c.h.b16 %v1682
      %v2034 = vunpack.c.l.b16 %v1683
      %v2035 = vunpack.c.h.b16 %v1683
      %v2036 = vunpack.c.l.b16 %v1684
      %v2037 = vunpack.c.h.b16 %v1684
      %v2038 = vunpack.c.l.b16 %v1685
      %v2039 = vunpack.c.h.b16 %v1685
      %v2040 = vunpack.c.l.b16 %v1686
      %v2041 = vunpack.c.h.b16 %v1686
      %v2042 = vunpack.c.l.b16 %v1687
      %v2043 = vunpack.c.h.b16 %v1687
      %v2044 = vunpack.c.l.b16 %v1688
      %v2045 = vunpack.c.h.b16 %v1688
      %v2046 = vunpack.c.l.b16 %v1689
      %v2047 = vunpack.c.h.b16 %v1689
      %v2048 = vunpack.c.l.b16 %v1690
      %v2049 = vunpack.c.h.b16 %v1690
      %v2050 = vunpack.c.l.b16 %v1691
      %v2051 = vunpack.c.h.b16 %v1691
      %v2052 = vunpack.c.l.b16 %v1692
      %v2053 = vunpack.c.h.b16 %v1692
      %v2054 = vunpack.c.l.b16 %v1693
      %v2055 = vunpack.c.h.b16 %v1693
      %v2056 = vunpack.c.l.b16 %v1694
      %v2057 = vunpack.c.h.b16 %v1694
      %v2058 = vunpack.c.l.b16 %v1695
      %v2059 = vunpack.c.h.b16 %v1695
      %v2060 = vunpack.c.l.b16 %v1696
      %v2061 = vunpack.c.h.b16 %v1696
      %v2062 = vunpack.c.l.b16 %v1697
      %v2063 = vunpack.c.h.b16 %v1697
      %v2064 = vunpack.c.l.b16 %v1698
      %v2065 = vunpack.c.h.b16 %v1698
      %v2066 = vunpack.c.l.b16 %v1699
      %v2067 = vunpack.c.h.b16 %v1699
      %v2068 = vunpack.c.l.b16 %v1700
      %v2069 = vunpack.c.h.b16 %v1700
      %v2070 = vunpack.c.l.b16 %v1701
      %v2071 = vunpack.c.h.b16 %v1701
      %v2072 = vunpack.c.l.b16 %v1702
      %v2073 = vunpack.c.h.b16 %v1702
      %v2074 = vunpack.c.l.b16 %v1703
      %v2075 = vunpack.c.h.b16 %v1703
      %v2076 = vunpack.c.l.b16 %v1704
      %v2077 = vunpack.c.h.b16 %v1704
      %v2078 = vunpack.c.l.b16 %v1705
      %v2079 = vunpack.c.h.b16 %v1705
      %v2080 = vunpack.c.l.b16 %v1706
      %v2081 = vunpack.c.h.b16 %v1706
      %v2082 = vunpack.c.l.b16 %v1707
      %v2083 = vunpack.c.h.b16 %v1707
      %v2084 = vunpack.c.l.b16 %v1708
      %v2085 = vunpack.c.h.b16 %v1708
      %v2086 = vunpack.c.l.b16 %v1709
      %v2087 = vunpack.c.h.b16 %v1709
      %v2088 = vunpack.c.l.b16 %v1710
      %v2089 = vunpack.c.h.b16 %v1710
      %v2090 = vunpack.c.l.b16 %v1711
      %v2091 = vunpack.c.h.b16 %v1711
      %v2092 = vunpack.c.l.b16 %v1712
      %v2093 = vunpack.c.h.b16 %v1712
      %v2094 = vunpack.c.l.b16 %v1713
      %v2095 = vunpack.c.h.b16 %v1713
      %v2096 = vunpack.c.l.b16 %v1714
      %v2097 = vunpack.c.h.b16 %v1714
      %v2098 = vunpack.c.l.b16 %v1715
      %v2099 = vunpack.c.h.b16 %v1715
      %v2100 = vunpack.c.l.b16 %v1716
      %v2101 = vunpack.c.h.b16 %v1716
      %v2102 = vunpack.c.l.b16 %v1717
      %v2103 = vunpack.c.h.b16 %v1717
      %v2104 = vunpack.c.l.b16 %v1718
      %v2105 = vunpack.c.h.b16 %v1718
      %v2106 = vunpack.c.l.b16 %v1719
      %v2107 = vunpack.c.h.b16 %v1719
      %v2108 = vunpack.c.l.b16 %v1720
      %v2109 = vunpack.c.h.b16 %v1720
      %v2110 = vunpack.c.l.b16 %v1721
      %v2111 = vunpack.c.h.b16 %v1721
      %v2112 = vunpack.c.l.b16 %v1722
      %v2113 = vunpack.c.h.b16 %v1722
      %v2114 = vunpack.c.l.b16 %v1723
      %v2115 = vunpack.c.h.b16 %v1723
      %v2116 = vunpack.c.l.b16 %v1724
      %v2117 = vunpack.c.h.b16 %v1724
      %v2118 = vunpack.c.l.b16 %v1725
      %v2119 = vunpack.c.h.b16 %v1725
      %v2120 = vunpack.c.l.b16 %v1726
      %v2121 = vunpack.c.h.b16 %v1726
      %v2122 = vunpack.c.l.b16 %v1727
      %v2123 = vunpack.c.h.b16 %v1727
      %v2124 = vunpack.c.l.b16 %v1728
      %v2125 = vunpack.c.h.b16 %v1728
      %v2126 = vunpack.c.l.b16 %v1729
      %v2127 = vunpack.c.h.b16 %v1729
      %v2128 = vunpack.c.l.b16 %v1730
      %v2129 = vunpack.c.h.b16 %v1730
      %v2130 = vunpack.c.l.b16 %v1731
      %v2131 = vunpack.c.h.b16 %v1731
      %v2132 = vunpack.c.l.b16 %v1732
      %v2133 = vunpack.c.h.b16 %v1732
      %v2134 = vunpack.c.l.b16 %v1733
      %v2135 = vunpack.c.h.b16 %v1733
      %v2136 = vunpack.c.l.b16 %v1734
      %v2137 = vunpack.c.h.b16 %v1734
      %v2138 = vunpack.c.l.b16 %v1735
      %v2139 = vunpack.c.h.b16 %v1735
      %v2140 = vunpack.c.l.b16 %v1736
      %v2141 = vunpack.c.h.b16 %v1736
      %v2142 = vunpack.c.l.b16 %v1737
      %v2143 = vunpack.c.h.b16 %v1737
      %v2144 = vpack.c.b16 %v2002, %v2000
      %v2145 = vpack.c.b16 %v2003, %v2001
      %v2146 = vpack.c.b16 %v2006, %v2004
      %v2147 = vpack.c.b16 %v2007, %v2005
      %v2148 = vpack.c.b16 %v2010, %v2008
      %v2149 = vpack.c.b16 %v2011, %v2009
      %v2150 = vpack.c.b16 %v2014, %v2012
      %v2151 = vpack.c.b16 %v2015, %v2013
      %v2152 = vpack.c.b16 %v2018, %v2016
      %v2153 = vpack.c.b16 %v2019, %v2017
      %v2154 = vpack.c.b16 %v2022, %v2020
      %v2155 = vpack.c.b16 %v2023, %v2021
      %v2156 = vpack.c.b16 %v2026, %v2024
      %v2157 = vpack.c.b16 %v2027, %v2025
      %v2158 = vpack.c.b16 %v2030, %v2028
      %v2159 = vpack.c.b16 %v2031, %v2029
      %v2160 = vpack.c.b16 %v2034, %v2032
      %v2161 = vpack.c.b16 %v2035, %v2033
      %v2162 = vpack.c.b16 %v2038, %v2036
      %v2163 = vpack.c.b16 %v2039, %v2037
      %v2164 = vpack.c.b16 %v2042, %v2040
      %v2165 = vpack.c.b16 %v2043, %v2041
      %v2166 = vpack.c.b16 %v2046, %v2044
      %v2167 = vpack.c.b16 %v2047, %v2045
      %v2168 = vpack.c.b16 %v2050, %v2048
      %v2169 = vpack.c.b16 %v2051, %v2049
      %v2170 = vpack.c.b16 %v2054, %v2052
      %v2171 = vpack.c.b16 %v2055, %v2053
      %v2172 = vpack.c.b16 %v2058, %v2056
      %v2173 = vpack.c.b16 %v2059, %v2057
      %v2174 = vpack.c.b16 %v2062, %v2060
      %v2175 = vpack.c.b16 %v2063, %v2061
      %v2176 = vpack.c.b16 %v2066, %v2064
      %v2177 = vpack.c.b16 %v2067, %v2065
      %v2178 = vpack.c.b16 %v2070, %v2068
      %v2179 = vpack.c.b16 %v2071, %v2069
      %v2180 = vpack.c.b16 %v2074, %v2072
      %v2181 = vpack.c.b16 %v2075, %v2073
      %v2182 = vpack.c.b16 %v2078, %v2076
      %v2183 = vpack.c.b16 %v2079, %v2077
      %v2184 = vpack.c.b16 %v2082, %v2080
      %v2185 = vpack.c.b16 %v2083, %v2081
      %v2186 = vpack.c.b16 %v2086, %v2084
      %v2187 = vpack.c.b16 %v2087, %v2085
      %v2188 = vpack.c.b16 %v2090, %v2088
      %v2189 = vpack.c.b16 %v2091, %v2089
      %v2190 = vpack.c.b16 %v2094, %v2092
      %v2191 = vpack.c.b16 %v2095, %v2093
      %v2192 = vpack.c.b16 %v2098, %v2096
      %v2193 = vpack.c.b16 %v2099, %v2097
      %v2194 = vpack.c.b16 %v2102, %v2100
      %v2195 = vpack.c.b16 %v2103, %v2101
      %v2196 = vpack.c.b16 %v2106, %v2104
      %v2197 = vpack.c.b16 %v2107, %v2105
      %v2198 = vpack.c.b16 %v2110, %v2108
      %v2199 = vpack.c.b16 %v2111, %v2109
      %v2200 = vpack.c.b16 %v2114, %v2112
      %v2201 = vpack.c.b16 %v2115, %v2113
      %v2202 = vpack.c.b16 %v2118, %v2116
      %v2203 = vpack.c.b16 %v2119, %v2117
      %v2204 = vpack.c.b16 %v2122, %v2120
      %v2205 = vpack.c.b16 %v2123, %v2121
      %v2206 = vpack.c.b16 %v2126, %v2124
      %v2207 = vpack.c.b16 %v2127, %v2125
      %v2208 = vpack.c.b16 %v2130, %v2128
      %v2209 = vpack.c.b16 %v2131, %v2129
      %v2210 = vpack.c.b16 %v2134, %v2132
      %v2211 = vpack.c.b16 %v2135, %v2133
      %v2212 = vpack.c.b16 %v2138, %v2136
      %v2213 = vpack.c.b16 %v2139, %v2137
      %v2214 = vpack.c.b16 %v2142, %v2140
      %v2215 = vpack.c.b16 %v2143, %v2141
      %v2289 = vsel %vm844, %v1822, 0
      %v2292 = vsel %vm844, %v1866, 0
      %v2295 = vsel %vm844, %v1911, 0
      %v2298 = vsel %vm844, %v1906, 0
      %2300 = vmatprep.subr.bf16.mxu0 %v2145
      %2301 = vmatpush1.bf16.msra.mxu0 %v2144
      %2302 = vmatprep.subr.bf16.mxu0 %v2147
      %2303 = vmatpush1.bf16.msra.mxu0 %v2146
      %2304 = vmatprep.subr.bf16.mxu0 %v2149
      %2305 = vmatpush1.bf16.msra.mxu0 %v2148
      %2306 = vmatprep.subr.bf16.mxu0 %v2151
      %2307 = vmatpush1.bf16.msra.mxu0 %v2150
      %2308 = vmatprep.subr.bf16.mxu0 %v2153
      %2309 = vmatpush1.bf16.msra.mxu0 %v2152
      %2310 = vmatprep.subr.bf16.mxu0 %v2155
      %2311 = vmatpush1.bf16.msra.mxu0 %v2154
      %2312 = vmatprep.subr.bf16.mxu0 %v2157
      %2313 = vmatpush1.bf16.msra.mxu0 %v2156
      %2314 = vmatprep.subr.bf16.mxu0 %v2159
      %2315 = vmatpush1.bf16.msra.mxu0 %v2158
      %2316 = vmatprep.subr.bf16.mxu0 %v2161
      %2317 = vmatpush1.bf16.msra.mxu0 %v2160
      %2318 = vmatprep.subr.bf16.mxu0 %v2163
      %2319 = vmatpush1.bf16.msra.mxu0 %v2162
      %2320 = vmatprep.subr.bf16.mxu0 %v2165
      %2321 = vmatpush1.bf16.msra.mxu0 %v2164
      %2322 = vmatprep.subr.bf16.mxu0 %v2167
      %2323 = vmatpush1.bf16.msra.mxu0 %v2166
      %2324 = vmatprep.subr.bf16.mxu0 %v2169
      %2325 = vmatpush1.bf16.msra.mxu0 %v2168
      %2326 = vmatprep.subr.bf16.mxu0 %v2171
      %2327 = vmatpush1.bf16.msra.mxu0 %v2170
      %2328 = vmatprep.subr.bf16.mxu0 %v2173
      %2329 = vmatpush1.bf16.msra.mxu0 %v2172
      %2330 = vmatprep.subr.bf16.mxu0 %v2175
      %2331 = vmatpush1.bf16.msra.mxu0 %v2174
      %2332 = vmatprep.mubr.bf16.mxu0 %v1772
      %2333 = vmatmul.mubr.bf16.gmra.mrb[0].mxu0 %v1755
      %v2334 = vpop.f32.mrb[0].mxu0
      %v2335 = vadd.f32 0.0, %v2334
      %v2336 = vpop.f32.mrb[0].mxu0
      %v2337 = vadd.f32 0.0, %v2336
      %v2338 = vpop.f32.mrb[0].mxu0
      %v2339 = vadd.f32 0.0, %v2338
      %v2340 = vpop.f32.mrb[0].mxu0
      %v2341 = vadd.f32 0.0, %v2340
      %2342 = vmatprep.mubr.bf16.mxu0 %v1840
      %2343 = vmatmul.mubr.bf16.gmra.mrb[0].mxu0 %v1831
      %v2344 = vpop.f32.mrb[0].mxu0
      %v2345 = vadd.f32 0.0, %v2344
      %v2346 = vpop.f32.mrb[0].mxu0
      %v2347 = vadd.f32 0.0, %v2346
      %v2348 = vpop.f32.mrb[0].mxu0
      %v2349 = vadd.f32 0.0, %v2348
      %v2350 = vpop.f32.mrb[0].mxu0
      %v2351 = vadd.f32 0.0, %v2350
      %2352 = vmatprep.mubr.bf16.mxu0 %v1884
      %2353 = vmatmul.mubr.bf16.gmra.mrb[0].mxu0 %v1875
      %v2354 = vpop.f32.mrb[0].mxu0
      %v2355 = vadd.f32 0.0, %v2354
      %v2356 = vpop.f32.mrb[0].mxu0
      %v2357 = vadd.f32 0.0, %v2356
      %v2358 = vpop.f32.mrb[0].mxu0
      %v2359 = vadd.f32 0.0, %v2358
      %v2360 = vpop.f32.mrb[0].mxu0
      %v2361 = vadd.f32 0.0, %v2360
      %2362 = vmatprep.mubr.bf16.mxu0 %v1879
      %2363 = vmatmul.mubr.bf16.gmra.mrb[0].mxu0 %v1870
      %v2364 = vpop.f32.mrb[0].mxu0
      %v2365 = vadd.f32 0.0, %v2364
      %v2366 = vpop.f32.mrb[0].mxu0
      %v2367 = vadd.f32 0.0, %v2366
      %v2368 = vpop.f32.mrb[0].mxu0
      %v2369 = vpop.f32.mrb[0].mxu0
      %2370 = vdwg.mxu0
      %2371 = vmatprep.subr.bf16.mxu0 %v2177
      %2372 = vmatpush1.bf16.msra.mxu0 %v2176
      %2373 = vmatprep.subr.bf16.mxu0 %v2179
      %2374 = vmatpush1.bf16.msra.mxu0 %v2178
      %2375 = vmatprep.subr.bf16.mxu0 %v2181
      %2376 = vmatpush1.bf16.msra.mxu0 %v2180
      %2377 = vmatprep.subr.bf16.mxu0 %v2183
      %2378 = vmatpush1.bf16.msra.mxu0 %v2182
      %2379 = vmatprep.subr.bf16.mxu0 %v2185
      %2380 = vmatpush1.bf16.msra.mxu0 %v2184
      %2381 = vmatprep.subr.bf16.mxu0 %v2187
      %2382 = vmatpush1.bf16.msra.mxu0 %v2186
      %2383 = vmatprep.subr.bf16.mxu0 %v2189
      %2384 = vmatpush1.bf16.msra.mxu0 %v2188
      %2385 = vmatprep.subr.bf16.mxu0 %v2191
      %2386 = vmatpush1.bf16.msra.mxu0 %v2190
      %2387 = vmatprep.subr.bf16.mxu0 %v2193
      %2388 = vmatpush1.bf16.msra.mxu0 %v2192
      %2389 = vmatprep.subr.bf16.mxu0 %v2195
      %2390 = vmatpush1.bf16.msra.mxu0 %v2194
      %2391 = vmatprep.subr.bf16.mxu0 %v2197
      %2392 = vmatpush1.bf16.msra.mxu0 %v2196
      %2393 = vmatprep.subr.bf16.mxu0 %v2199
      %2394 = vmatpush1.bf16.msra.mxu0 %v2198
      %2395 = vmatprep.subr.bf16.mxu0 %v2201
      %2396 = vmatpush1.bf16.msra.mxu0 %v2200
      %2397 = vmatprep.subr.bf16.mxu0 %v2203
      %2398 = vmatpush1.bf16.msra.mxu0 %v2202
      %2399 = vmatprep.subr.bf16.mxu0 %v2205
      %2400 = vmatpush1.bf16.msra.mxu0 %v2204
      %2401 = vmatprep.subr.bf16.mxu0 %v2207
      %2402 = vmatpush1.bf16.msra.mxu0 %v2206
      %2403 = vmatprep.mubr.bf16.mxu0 %v1806
      %2404 = vmatmul.mubr.bf16.gmra.mrb[0].mxu0 %v1789
      %v2405 = vpop.f32.mrb[0].mxu0
      %v2406 = vadd.f32 %v2335, %v2405
      %v2407 = vpop.f32.mrb[0].mxu0
      %v2408 = vadd.f32 %v2337, %v2407
      %v2409 = vpop.f32.mrb[0].mxu0
      %v2410 = vadd.f32 %v2339, %v2409
      %v2411 = vpop.f32.mrb[0].mxu0
      %v2412 = vadd.f32 %v2341, %v2411
      %2413 = vmatprep.mubr.bf16.mxu0 %v1858
      %2414 = vmatmul.mubr.bf16.gmra.mrb[0].mxu0 %v1849
      %v2415 = vpop.f32.mrb[0].mxu0
      %v2416 = vadd.f32 %v2345, %v2415
      %v2417 = vpop.f32.mrb[0].mxu0
      %v2418 = vadd.f32 %v2347, %v2417
      %v2419 = vpop.f32.mrb[0].mxu0
      %v2420 = vadd.f32 %v2349, %v2419
      %v2421 = vpop.f32.mrb[0].mxu0
      %v2422 = vadd.f32 %v2351, %v2421
      %2423 = vmatprep.mubr.bf16.mxu0 %v1902
      %2424 = vmatmul.mubr.bf16.gmra.mrb[0].mxu0 %v1893
      %v2425 = vpop.f32.mrb[0].mxu0
      %v2426 = vadd.f32 %v2355, %v2425
      %v2427 = vpop.f32.mrb[0].mxu0
      %v2428 = vadd.f32 %v2357, %v2427
      %v2429 = vpop.f32.mrb[0].mxu0
      %v2430 = vadd.f32 %v2359, %v2429
      %v2431 = vpop.f32.mrb[0].mxu0
      %v2432 = vadd.f32 %v2361, %v2431
      %2433 = vmatprep.mubr.bf16.mxu0 %v1897
      %2434 = vmatmul.mubr.bf16.gmra.mrb[0].mxu0 %v1888
      %v2435 = vpop.f32.mrb[0].mxu0
      %v2436 = vadd.f32 %v2365, %v2435
      %v2437 = vpop.f32.mrb[0].mxu0
      %v2438 = vadd.f32 %v2367, %v2437
      %v2439 = vpop.f32.mrb[0].mxu0
      %v2440 = vpop.f32.mrb[0].mxu0
      %2441 = vdwg.mxu0
      %2442 = vmatprep.subr.bf16.mxu0 %v2209
      %2443 = vmatpush1.bf16.msra.mxu0 %v2208
      %2444 = vmatprep.subr.bf16.mxu0 %v2211
      %2445 = vmatpush1.bf16.msra.mxu0 %v2210
      %2446 = vmatprep.subr.bf16.mxu0 %v2213
      %2447 = vmatpush1.bf16.msra.mxu0 %v2212
      %2448 = vmatprep.subr.bf16.mxu0 %v2215
      %2449 = vmatpush1.bf16.msra.mxu0 %v2214
      %2450 = vmatprep.subr.bf16.mxu0 0
      %2451 = vmatpush1.bf16.msra.mxu0 0
      %2452 = vmatprep.subr.bf16.mxu0 0
      %2453 = vmatpush1.bf16.msra.mxu0 0
      %2454 = vmatprep.subr.bf16.mxu0 0
      %2455 = vmatpush1.bf16.msra.mxu0 0
      %2456 = vmatprep.subr.bf16.mxu0 0
      %2457 = vmatpush1.bf16.msra.mxu0 0
      %2458 = vmatprep.subr.bf16.mxu0 0
      %2459 = vmatpush1.bf16.msra.mxu0 0
      %2460 = vmatprep.subr.bf16.mxu0 0
      %2461 = vmatpush1.bf16.msra.mxu0 0
      %2462 = vmatprep.subr.bf16.mxu0 0
      %2463 = vmatpush1.bf16.msra.mxu0 0
      %2464 = vmatprep.subr.bf16.mxu0 0
      %2465 = vmatpush1.bf16.msra.mxu0 0
      %2466 = vmatprep.subr.bf16.mxu0 0
      %2467 = vmatpush1.bf16.msra.mxu0 0
      %2468 = vmatprep.subr.bf16.mxu0 0
      %2469 = vmatpush1.bf16.msra.mxu0 0
      %2470 = vmatprep.subr.bf16.mxu0 0
      %2471 = vmatpush1.bf16.msra.mxu0 0
      %2472 = vmatprep.subr.bf16.mxu0 0
      %2473 = vmatpush1.bf16.msra.mxu0 0
      %2474 = vmatprep.mubr.bf16.mxu0 0
      %2475 = vmatmul.mubr.bf16.gmra.mrb[0].mxu0 %v2289
      %v2476 = vpop.f32.mrb[0].mxu0
      %v2477 = vadd.f32 %v2406, %v2476
      %v2478 = vpop.f32.mrb[0].mxu0
      %v2479 = vadd.f32 %v2408, %v2478
      %v2480 = vpop.f32.mrb[0].mxu0
      %v2481 = vadd.f32 %v2410, %v2480
      %v2482 = vpop.f32.mrb[0].mxu0
      %v2483 = vadd.f32 %v2412, %v2482
      %2484 = vmatprep.mubr.bf16.mxu0 0
      %2485 = vmatmul.mubr.bf16.gmra.mrb[0].mxu0 %v2292
      %v2486 = vpop.f32.mrb[0].mxu0
      %v2487 = vadd.f32 %v2416, %v2486
      %v2488 = vpop.f32.mrb[0].mxu0
      %v2489 = vadd.f32 %v2418, %v2488
      %v2490 = vpop.f32.mrb[0].mxu0
      %v2491 = vadd.f32 %v2420, %v2490
      %v2492 = vpop.f32.mrb[0].mxu0
      %v2493 = vadd.f32 %v2422, %v2492
      %2494 = vmatprep.mubr.bf16.mxu0 0
      %2495 = vmatmul.mubr.bf16.gmra.mrb[0].mxu0 %v2295
      %v2496 = vpop.f32.mrb[0].mxu0
      %v2497 = vadd.f32 %v2426, %v2496
      %v2498 = vpop.f32.mrb[0].mxu0
      %v2499 = vadd.f32 %v2428, %v2498
      %v2500 = vpop.f32.mrb[0].mxu0
      %v2501 = vadd.f32 %v2430, %v2500
      %v2502 = vpop.f32.mrb[0].mxu0
      %v2503 = vadd.f32 %v2432, %v2502
      %2504 = vmatprep.mubr.bf16.mxu0 0
      %2505 = vmatmul.mubr.bf16.gmra.mrb[0].mxu0 %v2298
      %v2506 = vpop.f32.mrb[0].mxu0
      %v2507 = vadd.f32 %v2436, %v2506
      %v2508 = vpop.f32.mrb[0].mxu0
      %v2509 = vadd.f32 %v2438, %v2508
      %v2510 = vpop.f32.mrb[0].mxu0
      %v2511 = vpop.f32.mrb[0].mxu0
      %2512 = vdwg.mxu0
      %v2513 = vadd.f32 %v1619, %v2477
      %v2514 = vadd.f32 %v1621, %v2479
      %v2515 = vadd.f32 %v1623, %v2481
      %v2516 = vadd.f32 %v1625, %v2483
      %v2517 = vadd.f32 %v1629, %v2487
      %v2518 = vadd.f32 %v1631, %v2489
      %v2519 = vadd.f32 %v1633, %v2491
      %v2520 = vadd.f32 %v1635, %v2493
      %v2521 = vadd.f32 %v1639, %v2497
      %v2522 = vadd.f32 %v1641, %v2499
      %v2523 = vadd.f32 %v1643, %v2501
      %v2524 = vadd.f32 %v1645, %v2503
      %v2525 = vadd.f32 %v1649, %v2507
      %v2526 = vadd.f32 %v1651, %v2509
      %v2527 = vld [vmem:[%s3] sm:$0x3]
      %v2529 = vlaneseq
      %v2530 = vshrl.u32 %v2529, 7
      %v2531 = vsub.s32 0, %v2530
      %v2532 = vrot.slane %v2527, %v2531
      %v2533 = vlaneseq
      %v2534 = vshrl.u32 %v2533, 7
      %v2535 = vsub.s32 1, %v2534
      %v2536 = vrot.slane %v2527, %v2535
      %v2539 = vadd.f32 %v2513, %v2532
      %v2540 = vadd.f32 %v2514, %v2536
      %v2541 = vadd.f32 %v2515, %v2532
      %v2542 = vadd.f32 %v2516, %v2536
      %v2543 = vadd.f32 %v2517, %v2532
      %v2544 = vadd.f32 %v2518, %v2536
      %v2545 = vadd.f32 %v2519, %v2532
      %v2546 = vadd.f32 %v2520, %v2536
      %v2547 = vadd.f32 %v2521, %v2532
      %v2548 = vadd.f32 %v2522, %v2536
      %v2549 = vadd.f32 %v2523, %v2532
      %v2550 = vadd.f32 %v2524, %v2536
      %v2551 = vadd.f32 %v2525, %v2532
      %v2552 = vadd.f32 %v2526, %v2536
      %v2553 = vmax.f32 %v2539, 0.0
      %v2554 = vmax.f32 %v2540, 0.0
      %v2555 = vmax.f32 %v2541, 0.0
      %v2556 = vmax.f32 %v2542, 0.0
      %v2557 = vmax.f32 %v2543, 0.0
      %v2558 = vmax.f32 %v2544, 0.0
      %v2559 = vmax.f32 %v2545, 0.0
      %v2560 = vmax.f32 %v2546, 0.0
      %v2561 = vmax.f32 %v2547, 0.0
      %v2562 = vmax.f32 %v2548, 0.0
      %v2563 = vmax.f32 %v2549, 0.0
      %v2564 = vmax.f32 %v2550, 0.0
      %v2565 = vmax.f32 %v2551, 0.0
      %v2566 = vmax.f32 %v2552, 0.0
      %2567 = vst [vmem:[%s217] sm:$0xff] %v2553
      %2568 = vst.msk [vmem:[%s217 + $0x8] sm:$0xff] %vm844, %v2554
      %2569 = vst [vmem:[%s217 + $0x18] sm:$0xff] %v2555
      %2570 = vst.msk [vmem:[%s217 + $0x20] sm:$0xff] %vm844, %v2556
      %2571 = vst [vmem:[%s217 + $0x30] sm:$0xff] %v2557
      %2572 = vst.msk [vmem:[%s217 + $0x38] sm:$0xff] %vm844, %v2558
      %2573 = vst [vmem:[%s217 + $0x48] sm:$0xff] %v2559
      %2574 = vst.msk [vmem:[%s217 + $0x50] sm:$0xff] %vm844, %v2560
      %2575 = vst [vmem:[%s217 + $0x60] sm:$0xff] %v2561
      %2576 = vst.msk [vmem:[%s217 + $0x68] sm:$0xff] %vm844, %v2562
      %2577 = vst [vmem:[%s217 + $0x78] sm:$0xff] %v2563
      %2578 = vst.msk [vmem:[%s217 + $0x80] sm:$0xff] %vm844, %v2564
      %2579 = vst [vmem:[%s217 + $0x90] sm:$0x1] %v2565
      %vm2580 = vcmask 516096
      %2581 = vst.msk [vmem:[%s217 + $0x98] sm:$0x1] %vm2580, %v2566
      %2596 = vrot.lane.b32.xlu0 %v220, 64
      %v2597 = vpop.permute.xlu0 %2596
      %2598 = vrot.lane.b32.xlu0 %v221, 64
      %v2599 = vpop.permute.xlu0 %2598
      %2600 = vrot.lane.b32.xlu0 %v225, 64
      %v2601 = vpop.permute.xlu0 %2600
      %2602 = vrot.lane.b32.xlu0 %v226, 64
      %v2603 = vpop.permute.xlu0 %2602
      %2604 = vrot.lane.b32.xlu0 %v230, 64
      %v2605 = vpop.permute.xlu0 %2604
      %2606 = vrot.lane.b32.xlu0 %v231, 64
      %v2607 = vpop.permute.xlu0 %2606
      %2608 = vrot.lane.b32.xlu0 %v235, 64
      %v2609 = vpop.permute.xlu0 %2608
      %2610 = vrot.lane.b32.xlu0 %v236, 64
      %v2611 = vpop.permute.xlu0 %2610
      %2612 = vrot.lane.b32.xlu0 %v240, 64
      %v2613 = vpop.permute.xlu0 %2612
      %2614 = vrot.lane.b32.xlu0 %v241, 64
      %v2615 = vpop.permute.xlu0 %2614
      %2616 = vrot.lane.b32.xlu0 %v245, 64
      %v2617 = vpop.permute.xlu0 %2616
      %2618 = vrot.lane.b32.xlu0 %v246, 64
      %v2619 = vpop.permute.xlu0 %2618
      %2620 = vrot.lane.b32.xlu0 %v250, 64
      %v2621 = vpop.permute.xlu0 %2620
      %2622 = vrot.lane.b32.xlu0 %v251, 64
      %v2623 = vpop.permute.xlu0 %2622
      %v2624 = vsel %vm844, %v2597, %v2599
      %v2625 = vsel %vm844, %v2601, %v2603
      %v2626 = vsel %vm844, %v2605, %v2607
      %v2627 = vsel %vm844, %v2609, %v2611
      %v2628 = vsel %vm844, %v2613, %v2615
      %v2629 = vsel %vm844, %v2617, %v2619
      %v2630 = vsel %vm844, %v2621, %v2623
      %v2645 = vmax.f32 %v219, %v2624
      %v2646 = vmax.f32 %v220, %v2599
      %v2647 = vmax.f32 %v224, %v2625
      %v2648 = vmax.f32 %v225, %v2603
      %v2649 = vmax.f32 %v229, %v2626
      %v2650 = vmax.f32 %v230, %v2607
      %v2651 = vmax.f32 %v234, %v2627
      %v2652 = vmax.f32 %v235, %v2611
      %v2653 = vmax.f32 %v239, %v2628
      %v2654 = vmax.f32 %v240, %v2615
      %v2655 = vmax.f32 %v244, %v2629
      %v2656 = vmax.f32 %v245, %v2619
      %v2657 = vmax.f32 %v249, %v2630
      %v2658 = vmax.f32 %v250, %v2623
      %v2659 = vmax.f32 %v2645, %v222
      %v2660 = vmax.f32 %v2646, %v223
      %v2661 = vmax.f32 %v2647, %v227
      %v2662 = vmax.f32 %v2648, %v228
      %v2663 = vmax.f32 %v2649, %v232
      %v2664 = vmax.f32 %v2650, %v233
      %v2665 = vmax.f32 %v2651, %v237
      %v2666 = vmax.f32 %v2652, %v238
      %v2667 = vmax.f32 %v2653, %v242
      %v2668 = vmax.f32 %v2654, %v243
      %v2669 = vmax.f32 %v2655, %v247
      %v2670 = vmax.f32 %v2656, %v248
      %v2671 = vmax.f32 %v2657, %v252
      %v2672 = vmax.f32 %v2658, %v253
      %2687 = vrot.lane.b32.xlu0 %v255, 64
      %v2688 = vpop.permute.xlu0 %2687
      %2689 = vrot.lane.b32.xlu0 %v256, 64
      %v2690 = vpop.permute.xlu0 %2689
      %2691 = vrot.lane.b32.xlu0 %v260, 64
      %v2692 = vpop.permute.xlu0 %2691
      %2693 = vrot.lane.b32.xlu0 %v261, 64
      %v2694 = vpop.permute.xlu0 %2693
      %2695 = vrot.lane.b32.xlu0 %v265, 64
      %v2696 = vpop.permute.xlu0 %2695
      %2697 = vrot.lane.b32.xlu0 %v266, 64
      %v2698 = vpop.permute.xlu0 %2697
      %2699 = vrot.lane.b32.xlu0 %v270, 64
      %v2700 = vpop.permute.xlu0 %2699
      %2701 = vrot.lane.b32.xlu0 %v271, 64
      %v2702 = vpop.permute.xlu0 %2701
      %2703 = vrot.lane.b32.xlu0 %v275, 64
      %v2704 = vpop.permute.xlu0 %2703
      %2705 = vrot.lane.b32.xlu0 %v276, 64
      %v2706 = vpop.permute.xlu0 %2705
      %2707 = vrot.lane.b32.xlu0 %v280, 64
      %v2708 = vpop.permute.xlu0 %2707
      %2709 = vrot.lane.b32.xlu0 %v281, 64
      %v2710 = vpop.permute.xlu0 %2709
      %2711 = vrot.lane.b32.xlu0 %v285, 64
      %v2712 = vpop.permute.xlu0 %2711
      %2713 = vrot.lane.b32.xlu0 %v286, 64
      %v2714 = vpop.permute.xlu0 %2713
      %v2715 = vsel %vm844, %v2688, %v2690
      %v2716 = vsel %vm844, %v2692, %v2694
      %v2717 = vsel %vm844, %v2696, %v2698
      %v2718 = vsel %vm844, %v2700, %v2702
      %v2719 = vsel %vm844, %v2704, %v2706
      %v2720 = vsel %vm844, %v2708, %v2710
      %v2721 = vsel %vm844, %v2712, %v2714
      %v2736 = vmax.f32 %v254, %v2715
      %v2737 = vmax.f32 %v255, %v2690
      %v2738 = vmax.f32 %v259, %v2716
      %v2739 = vmax.f32 %v260, %v2694
      %v2740 = vmax.f32 %v264, %v2717
      %v2741 = vmax.f32 %v265, %v2698
      %v2742 = vmax.f32 %v269, %v2718
      %v2743 = vmax.f32 %v270, %v2702
      %v2744 = vmax.f32 %v274, %v2719
      %v2745 = vmax.f32 %v275, %v2706
      %v2746 = vmax.f32 %v279, %v2720
      %v2747 = vmax.f32 %v280, %v2710
      %v2748 = vmax.f32 %v284, %v2721
      %v2749 = vmax.f32 %v285, %v2714
      %v2750 = vmax.f32 %v2736, %v257
      %v2751 = vmax.f32 %v2737, %v258
      %v2752 = vmax.f32 %v2738, %v262
      %v2753 = vmax.f32 %v2739, %v263
      %v2754 = vmax.f32 %v2740, %v267
      %v2755 = vmax.f32 %v2741, %v268
      %v2756 = vmax.f32 %v2742, %v272
      %v2757 = vmax.f32 %v2743, %v273
      %v2758 = vmax.f32 %v2744, %v277
      %v2759 = vmax.f32 %v2745, %v278
      %v2760 = vmax.f32 %v2746, %v282
      %v2761 = vmax.f32 %v2747, %v283
      %v2762 = vmax.f32 %v2748, %v287
      %v2763 = vmax.f32 %v2749, %v288
      %v2764 = vmax.f32 %v2659, %v2750
      %v2765 = vmax.f32 %v2660, %v2751
      %v2766 = vmax.f32 %v2661, %v2752
      %v2767 = vmax.f32 %v2662, %v2753
      %v2768 = vmax.f32 %v2663, %v2754
      %v2769 = vmax.f32 %v2664, %v2755
      %v2770 = vmax.f32 %v2665, %v2756
      %v2771 = vmax.f32 %v2666, %v2757
      %v2772 = vmax.f32 %v2667, %v2758
      %v2773 = vmax.f32 %v2668, %v2759
      %v2774 = vmax.f32 %v2669, %v2760
      %v2775 = vmax.f32 %v2670, %v2761
      %v2776 = vmax.f32 %v2671, %v2762
      %v2777 = vmax.f32 %v2672, %v2763
      %2782 = vrot.lane.b32.xlu0 %v290, 64
      %v2783 = vpop.permute.xlu0 %2782
      %2784 = vrot.lane.b32.xlu0 %v291, 64
      %v2785 = vpop.permute.xlu0 %2784
      %2786 = vrot.lane.b32.xlu0 %v295, 64
      %v2787 = vpop.permute.xlu0 %2786
      %2788 = vrot.lane.b32.xlu0 %v296, 64
      %v2789 = vpop.permute.xlu0 %2788
      %v2790 = vsel %vm844, %v2783, %v2785
      %v2791 = vsel %vm844, %v2787, %v2789
      %v2796 = vmax.f32 %v289, %v2790
      %v2797 = vmax.f32 %v290, %v2785
      %v2798 = vmax.f32 %v294, %v2791
      %v2799 = vmax.f32 %v295, %v2789
      %v2800 = vmax.f32 %v2796, %v292
      %v2801 = vmax.f32 %v2797, %v293
      %v2802 = vmax.f32 %v2798, %v297
      %v2803 = vmax.f32 %v2799, %v298
      %vm2818 = vcmask 1040384
      %v2819 = vrot.slane %v2800, 7
      %v2820 = vrot.slane %v2661, 7
      %v2821 = vsel %vm2818, %v2819, %v2820
      %v2822 = vrot.slane %v2801, 7
      %v2823 = vrot.slane %v2662, 7
      %v2824 = vsel %vm2818, %v2822, %v2823
      %v2825 = vrot.slane %v2663, 7
      %v2826 = vsel %vm2818, %v2820, %v2825
      %v2827 = vrot.slane %v2664, 7
      %v2828 = vsel %vm2818, %v2823, %v2827
      %v2829 = vrot.slane %v2665, 7
      %v2830 = vsel %vm2818, %v2825, %v2829
      %v2831 = vrot.slane %v2666, 7
      %v2832 = vsel %vm2818, %v2827, %v2831
      %v2833 = vrot.slane %v2667, 7
      %v2834 = vsel %vm2818, %v2829, %v2833
      %v2835 = vrot.slane %v2668, 7
      %v2836 = vsel %vm2818, %v2831, %v2835
      %v2837 = vrot.slane %v2669, 7
      %v2838 = vsel %vm2818, %v2833, %v2837
      %v2839 = vrot.slane %v2670, 7
      %v2840 = vsel %vm2818, %v2835, %v2839
      %v2841 = vrot.slane %v2802, 7
      %v2842 = vsel %vm2818, %v2837, %v2841
      %v2843 = vrot.slane %v2803, 7
      %v2844 = vsel %vm2818, %v2839, %v2843
      %v2859 = vmax.f32 %v2764, %v2821
      %v2860 = vmax.f32 %v2765, %v2824
      %v2861 = vmax.f32 %v2766, %v2826
      %v2862 = vmax.f32 %v2767, %v2828
      %v2863 = vmax.f32 %v2768, %v2830
      %v2864 = vmax.f32 %v2769, %v2832
      %v2865 = vmax.f32 %v2770, %v2834
      %v2866 = vmax.f32 %v2771, %v2836
      %v2867 = vmax.f32 %v2772, %v2838
      %v2868 = vmax.f32 %v2773, %v2840
      %v2869 = vmax.f32 %v2774, %v2842
      %v2870 = vmax.f32 %v2775, %v2844
      %v2871 = vmax.f32 %v2776, %v2841
      %v2872 = vmax.f32 %v2777, %v2843
      %2887 = vrot.lane.b32.xlu0 %v2859, 64
      %v2888 = vpop.permute.xlu0 %2887
      %2889 = vrot.lane.b32.xlu0 %v2860, 64
      %v2890 = vpop.permute.xlu0 %2889
      %2891 = vrot.lane.b32.xlu0 %v2861, 64
      %v2892 = vpop.permute.xlu0 %2891
      %2893 = vrot.lane.b32.xlu0 %v2862, 64
      %v2894 = vpop.permute.xlu0 %2893
      %2895 = vrot.lane.b32.xlu0 %v2863, 64
      %v2896 = vpop.permute.xlu0 %2895
      %2897 = vrot.lane.b32.xlu0 %v2864, 64
      %v2898 = vpop.permute.xlu0 %2897
      %2899 = vrot.lane.b32.xlu0 %v2865, 64
      %v2900 = vpop.permute.xlu0 %2899
      %2901 = vrot.lane.b32.xlu0 %v2866, 64
      %v2902 = vpop.permute.xlu0 %2901
      %2903 = vrot.lane.b32.xlu0 %v2867, 64
      %v2904 = vpop.permute.xlu0 %2903
      %2905 = vrot.lane.b32.xlu0 %v2868, 64
      %v2906 = vpop.permute.xlu0 %2905
      %2907 = vrot.lane.b32.xlu0 %v2869, 64
      %v2908 = vpop.permute.xlu0 %2907
      %2909 = vrot.lane.b32.xlu0 %v2870, 64
      %v2910 = vpop.permute.xlu0 %2909
      %2911 = vrot.lane.b32.xlu0 %v2871, 64
      %v2912 = vpop.permute.xlu0 %2911
      %2913 = vrot.lane.b32.xlu0 %v2872, 64
      %v2914 = vpop.permute.xlu0 %2913
      %v2915 = vsel %vm844, %v2888, %v2890
      %v2916 = vsel %vm844, %v2892, %v2894
      %v2917 = vsel %vm844, %v2896, %v2898
      %v2918 = vsel %vm844, %v2900, %v2902
      %v2919 = vsel %vm844, %v2904, %v2906
      %v2920 = vsel %vm844, %v2908, %v2910
      %v2921 = vsel %vm844, %v2912, %v2914
      %vm2936 = vcmask 1048064
      %2937 = vst.msk [vmem:[%s217 + $0x8] sm:$0xff] %vm2936, %v2888
      %2938 = vst [vmem:[%s217 + $0x10] sm:$0xff] %v2915
      %2939 = vst.msk [vmem:[%s217 + $0x20] sm:$0xff] %vm2936, %v2892
      %2940 = vst [vmem:[%s217 + $0x28] sm:$0xff] %v2916
      %2941 = vst.msk [vmem:[%s217 + $0x38] sm:$0xff] %vm2936, %v2896
      %2942 = vst [vmem:[%s217 + $0x40] sm:$0xff] %v2917
      %2943 = vst.msk [vmem:[%s217 + $0x50] sm:$0xff] %vm2936, %v2900
      %2944 = vst [vmem:[%s217 + $0x58] sm:$0xff] %v2918
      %2945 = vst.msk [vmem:[%s217 + $0x68] sm:$0xff] %vm2936, %v2904
      %2946 = vst [vmem:[%s217 + $0x70] sm:$0xff] %v2919
      %2947 = vst.msk [vmem:[%s217 + $0x80] sm:$0xff] %vm2936, %v2908
      %2948 = vst [vmem:[%s217 + $0x88] sm:$0xff] %v2920
      %vm2949 = vcmask 1040896
      %2950 = vst.msk [vmem:[%s217 + $0x98] sm:$0x1] %vm2949, %v2912
      %2951 = vst [vmem:[%s217 + $0xa0] sm:$0x1] %v2921
      %p2952 = scmp.lt.s32.totalorder %s15, 1
      %s2953 = scalar_select %p2952, %s15, 1
      %s2954 = smul.addr %s2953, 21
      %s2955 = smul.addr %s2954, 8
      %s2956 = scalar_lea.vmem %s4, %s2955
      // Predicated region
      $region37: #{mixed_5a_forward.1} parent=35 // pred_check
        %p2957 = pneg %p127
      $region38: #{mixed_5a_forward.1} parent=35 // pred_check_branch
        %2959 = sbr.rel (%p2957) target = $region40
      $region39: #{mixed_5a_forward.1} parent=35 // pred_region
        _
      $region40: #{mixed_5a_forward.1} parent=35 // pred_fallthru
        _
    $region36: #{mixed_5a_forward.1} parent=5 // pred_fallthru
      _
    %p2960 = scmp.le.s32.totalorder 2, %s10
    // Predicated region
    $region41: #{mixed_5a_forward.1} parent=5 // pred_check
      %p2961 = pneg %p2960
    $region42: #{mixed_5a_forward.1} parent=5 // pred_check_branch
      %2963 = sbr.rel (%p2961) target = $region44
    $region43: #{mixed_5a_forward.1} parent=5 // pred_region
      %s2964 = ssub.s32 %s10, 2
      // Predicated region
      $region45: #{mixed_5a_forward.1} parent=43 // pred_check
        %p2965 = pneg %p133
      $region46: #{mixed_5a_forward.1} parent=43 // pred_check_branch
        %2967 = sbr.rel (%p2965) target = $region48
      $region47: #{mixed_5a_forward.1} parent=43 // pred_region
        %p2968 = scmp.lt.s32.totalorder %s16, 1
        %s2969 = scalar_select %p2968, %s16, 1
        %s2970 = smul.addr %s2969, 21
        %s2971 = smul.addr %s2970, 8
        %s2972 = scalar_lea.vmem %s4, %s2971
      $region48: #{mixed_5a_forward.1} parent=43 // pred_fallthru
        _
    $region44: #{mixed_5a_forward.1} parent=5 // pred_fallthru
      _
  $region6: #{mixed_5a_forward.1} parent=0 // loop_footer
    %s14 = sadd.s32 1, %s10
  $region7: #{mixed_5a_forward.1} parent=0 // loop_footer_branch
    %9 = sbr.rel target = $region3
  $region8: #{mixed_5a_forward.1} parent=0 // loop_exit
    _

</llo_original>
